<compile_context>
chip_gen: v7x
topology: tpu7x:2x2x1
jax: 0.10.0
libtpu: 0.0.40
codegen_flags: <defaults>
</compile_context>

<pallas_src>
import functools

import jax
import jax.numpy as jnp
from jax.experimental import pallas as pl
from jax.experimental.pallas import tpu as pltpu

_EPS = 1e-5
_HI = jax.lax.Precision.HIGHEST  # reference only (outside the kernel)


def _round_up(a: int, b: int) -> int:
    return ((a + b - 1) // b) * b


def _split_bf16(v):
    """Split an f32 array into bf16 hi/lo parts (hi + lo ~ 16 mantissa bits)."""
    hi = v.astype(jnp.bfloat16)
    lo = (v - hi.astype(jnp.float32)).astype(jnp.bfloat16)
    return hi, lo


def _dot3(x_f32, w_hi, w_lo):
    """f32 x @ (w_hi + w_lo) via three single-pass bf16 MXU matmuls (~bf16_3x)."""
    xh, xl = _split_bf16(x_f32)
    return (jnp.dot(xh, w_hi, preferred_element_type=jnp.float32)
            + jnp.dot(xl, w_hi, preferred_element_type=jnp.float32)
            + jnp.dot(xh, w_lo, preferred_element_type=jnp.float32))


def _group_sum(v_f32, ones_blk):
    """Segmented (per F-lane group) row sum, broadcast within each group,
    via two single-pass bf16 matmuls against a block-diagonal ones matrix."""
    vh, vl = _split_bf16(v_f32)
    return (jnp.dot(vh, ones_blk, preferred_element_type=jnp.float32)
            + jnp.dot(vl, ones_blk, preferred_element_type=jnp.float32))


def _tds_fc_kernel(x_ref, w_ref, p_ref, o_ref, *, use_seg, inv_f):
    """One row-tile of the TDS fully-connected block.

    x_ref : (BLOCK_ROWS, Fp)        packed input rows (Fp = PACK * F)
    w_ref : (n_planes, Fp, Fp) bf16 [w1_hi, w1_lo, w2_hi, w2_lo (, ones_blk)]
    p_ref : (8, Fp) f32             rows [b1, b2, gamma, beta, 0, 0, 0, 0]
    o_ref : (BLOCK_ROWS, Fp)        packed output rows
    """
    x = x_ref[...].astype(jnp.float32)
    p = p_ref[...]
    b1, b2, gamma, beta = p[0:1, :], p[1:2, :], p[2:3, :], p[3:4, :]

    h = jnp.maximum(_dot3(x, w_ref[0], w_ref[1]) + b1, 0.0)   # Linear + ReLU
    y = _dot3(h, w_ref[2], w_ref[3]) + b2 + x                 # Linear + residual

    if use_seg:
        # Packed path: per-group mean/var via block-diagonal ones matmul (MXU),
        # 1/F folded into an f32 scalar multiply.
        ones_blk = w_ref[4]
        mean = _group_sum(y, ones_blk) * inv_f
        c = y - mean
        var = _group_sum(c * c, ones_blk) * inv_f
    else:
        # pack == 1: LayerNorm stats as plain lane reductions (VPU/XLU),
        # no seg matrix built or DMA'd.
        mean = jnp.mean(y, axis=-1, keepdims=True)
        c = y - mean
        var = jnp.mean(c * c, axis=-1, keepdims=True)

    o_ref[...] = (c * jax.lax.rsqrt(var + _EPS) * gamma + beta).astype(o_ref.dtype)


def _pick_block_rows(tile_rows, packed_rows, fp, n_planes, x_itemsize):
    """Largest row tile that (conservatively) fits scoped VMEM on all chips."""
    budget = 24 * 1024 * 1024                      # below the 32 MiB limit we request
    const_bytes = 2 * (n_planes * fp * fp * 2 + 8 * fp * 4)   # double-buffered consts
    per_row = 4 * fp * x_itemsize + 8 * fp * 4     # dbl-buffered io tiles + f32 temps
    avail = max(budget - const_bytes, 1 << 20)
    cap = max(8, (avail // per_row) // 8 * 8)
    block_rows = min(_round_up(int(tile_rows), 8), cap)
    if packed_rows <= block_rows:
        if packed_rows >= 16:
            # >= 2 grid steps so the ("parallel",) axis can feed both v7x TCs.
            block_rows = _round_up((packed_rows + 1) // 2, 8)
        else:
            block_rows = packed_rows               # single exact (full-dim) tile
    return block_rows


def make_tds_fc(w1, b1, w2, b2, gamma, beta, *, tile_rows=2048):
    """Prepare constants once and return apply(x) for x of shape (T, N, F).

    w1, w2 are (F_in, F_out), i.e. the transpose of torch.nn.Linear.weight.
    """
    F = int(w1.shape[0])
    assert w1.shape == (F, F) and w2.shape == (F, F)

    if F <= 128 and 128 % F == 0:
        pack = 256 // F          # Fp = 256: fills the 256-wide MXU on v6e/v7x
    else:
        pack = 1
        # TODO(synk): for F < 128 with 128 % F != 0, pad F up to a divisor of 128
        # (zero weight rows/cols, gamma=1/beta=0 in pad lanes) to keep lane-dense
        # stores instead of this pack=1 fallback.
    fp = pack * F
    use_seg = pack > 1

    # --- One-time constant prep (hoisted out of the per-call path). ---
    eye = jnp.eye(pack, dtype=jnp.float32)
    w1b = jnp.kron(eye, w1.astype(jnp.float32))    # block-diagonal (fp, fp)
    w2b = jnp.kron(eye, w2.astype(jnp.float32))
    planes = list(_split_bf16(w1b)) + list(_split_bf16(w2b))
    if use_seg:
        planes.append(jnp.kron(eye, jnp.ones((F, F), jnp.float32)).astype(jnp.bfloat16))
    wslab = jnp.stack(planes)                      # (n_planes, fp, fp) bf16
    n_planes = int(wslab.shape[0])

    def _tile_vec(v):
        return jnp.tile(v.astype(jnp.float32), pack)

    pslab = jnp.zeros((8, fp), jnp.float32)
    pslab = pslab.at[0].set(_tile_vec(b1)).at[1].set(_tile_vec(b2))
    pslab = pslab.at[2].set(_tile_vec(gamma)).at[3].set(_tile_vec(beta))

    kernel = functools.partial(_tds_fc_kernel, use_seg=use_seg, inv_f=1.0 / F)

    def apply(x):
        T, N, f_in = x.shape
        assert f_in == F
        rows = T * N

        x2d = x.reshape(rows, F)
        pad = (-rows) % pack                       # tiny (< pack rows), only if ragged
        if pad:
            x2d = jnp.pad(x2d, ((0, pad), (0, 0)))
        packed_rows = (rows + pad) // pack
        xp = x2d.reshape(packed_rows, fp)          # free reshape: pack rows into lanes

        block_rows = _pick_block_rows(tile_rows, packed_rows, fp, n_planes,
                                      x.dtype.itemsize)
        grid = (pl.cdiv(packed_rows, block_rows),)  # ragged last tile handled by Pallas

        out = pl.pallas_call(
            kernel,
            out_shape=jax.ShapeDtypeStruct((packed_rows, fp), x.dtype),
            grid_spec=pltpu.PrefetchScalarGridSpec(
                num_scalar_prefetch=0,
                grid=grid,
                in_specs=[
                    pl.BlockSpec((block_rows, fp), lambda i: (i, 0)),        # x rows
                    pl.BlockSpec((n_planes, fp, fp), lambda i: (0, 0, 0)),   # weights slab
                    pl.BlockSpec((8, fp), lambda i: (0, 0)),                 # b1/b2/gamma/beta
                ],
                out_specs=pl.BlockSpec((block_rows, fp), lambda i: (i, 0)),
            ),
            compiler_params=pltpu.CompilerParams(
                dimension_semantics=("parallel",),
                vmem_limit_bytes=32 * 1024 * 1024,
            ),
        )(xp, wslab, pslab)

        out2d = out.reshape(packed_rows * pack, F)
        if pad:
            out2d = out2d[:rows]
        return out2d.reshape(T, N, F)

    return apply


def reference(x, w1, b1, w2, b2, gamma, beta):
    xf = x.astype(jnp.float32)
    h = jnp.maximum(jnp.dot(xf, w1, precision=_HI) + b1, 0.0)
    y = jnp.dot(h, w2, precision=_HI) + b2 + xf
    mean = jnp.mean(y, axis=-1, keepdims=True)
    var = jnp.mean((y - mean) ** 2, axis=-1, keepdims=True)
    return ((y - mean) * jax.lax.rsqrt(var + _EPS) * gamma + beta).astype(x.dtype)


if __name__ == "__main__":
    key = jax.random.PRNGKey(0)
    kx, kw1, kb1, kw2, kb2, kg, kb, kx2, kx3 = jax.random.split(key, 9)

    # --- Case 1: F=32 (8 logical rows packed into 256 lanes), single tile. ---
    T, N, F = 8, 2, 32
    x = jax.random.normal(kx, (T, N, F), dtype=jnp.float32)
    scale = 1.0 / jnp.sqrt(jnp.float32(F))
    w1 = jax.random.uniform(kw1, (F, F), jnp.float32, -scale, scale)   # (in, out) = torch W.T
    b1 = jax.random.uniform(kb1, (F,), jnp.float32, -scale, scale)
    w2 = jax.random.uniform(kw2, (F, F), jnp.float32, -scale, scale)
    b2 = jax.random.uniform(kb2, (F,), jnp.float32, -scale, scale)
    gamma = 1.0 + 0.1 * jax.random.normal(kg, (F,), dtype=jnp.float32)
    beta = 0.1 * jax.random.normal(kb, (F,), dtype=jnp.float32)

    fwd = jax.jit(make_tds_fc(w1, b1, w2, b2, gamma, beta))
    out = jax.block_until_ready(fwd(x))
    ref = reference(x, w1, b1, w2, b2, gamma, beta)
    assert out.shape == (T, N, F)
    assert jnp.allclose(out, ref, atol=1e-3, rtol=1e-3), "mismatch (packed, single tile)"

    # --- Case 2: ragged row count + multi-tile grid (partial last block). ---
    T2, N2 = 25, 3
    x2 = jax.random.normal(kx2, (T2, N2, F), dtype=jnp.float32)
    fwd_small = jax.jit(make_tds_fc(w1, b1, w2, b2, gamma, beta, tile_rows=8))
    out2 = jax.block_until_ready(fwd_small(x2))
    ref2 = reference(x2, w1, b1, w2, b2, gamma, beta)
    assert out2.shape == (T2, N2, F)
    assert jnp.allclose(out2, ref2, atol=1e-3, rtol=1e-3), "mismatch (ragged, multi-tile)"

    # --- Case 3: F=256 -> pack=1 path, LayerNorm stats via lane reductions. ---
    T3, N3, F3 = 4, 2, 256
    x3 = jax.random.normal(kx3, (T3, N3, F3), dtype=jnp.float32)
    scale3 = 1.0 / jnp.sqrt(jnp.float32(F3))
    w1c = jax.random.uniform(kw1, (F3, F3), jnp.float32, -scale3, scale3)
    b1c = jax.random.uniform(kb1, (F3,), jnp.float32, -scale3, scale3)
    w2c = jax.random.uniform(kw2, (F3, F3), jnp.float32, -scale3, scale3)
    b2c = jax.random.uniform(kb2, (F3,), jnp.float32, -scale3, scale3)
    gammac = 1.0 + 0.1 * jax.random.normal(kg, (F3,), dtype=jnp.float32)
    betac = 0.1 * jax.random.normal(kb, (F3,), dtype=jnp.float32)
    fwd3 = jax.jit(make_tds_fc(w1c, b1c, w2c, b2c, gammac, betac))
    out3 = jax.block_until_ready(fwd3(x3))
    ref3 = reference(x3, w1c, b1c, w2c, b2c, gammac, betac)
    assert out3.shape == (T3, N3, F3)
    assert jnp.allclose(out3, ref3, atol=1e-3, rtol=1e-3), "mismatch (pack=1 lane-LN)"

    print("KERNEL_OK")
</pallas_src>

<mosaic_0001>
module attributes {stable_mosaic.version = 11 : i64} {
  func.func @_tds_fc_kernel(%arg0: i32, %arg1: memref<2x256xf32, #tpu.memory_space<vmem>>, %arg2: memref<5x256x256xbf16, #tpu.memory_space<vmem>>, %arg3: memref<8x256xf32, #tpu.memory_space<vmem>>, %arg4: memref<2x256xf32, #tpu.memory_space<vmem>>) attributes {dimension_semantics = [#tpu.dimension_semantics<parallel>], iteration_bounds = array<i64: 1>, scalar_prefetch = 0 : i64, scratch_operands = 0 : i64, tpu.core_type = #tpu.core_type<tc>, window_params = [{transform_indices = @transform_0, window_bounds = array<i64: 2, 256>}, {pipeline_mode = #tpu.pipeline_mode<synchronous>, transform_indices = @transform_1, window_bounds = array<i64: 5, 256, 256>}, {pipeline_mode = #tpu.pipeline_mode<synchronous>, transform_indices = @transform_2, window_bounds = array<i64: 8, 256>}, {transform_indices = @transform_3, window_bounds = array<i64: 2, 256>}]} {
    %c0 = arith.constant 0 : index
    %c0_0 = arith.constant 0 : index
    %0 = vector.load %arg1[%c0, %c0_0] : memref<2x256xf32, #tpu.memory_space<vmem>>, vector<2x256xf32>
    %c0_1 = arith.constant 0 : index
    %c0_2 = arith.constant 0 : index
    %1 = vector.load %arg3[%c0_1, %c0_2] : memref<8x256xf32, #tpu.memory_space<vmem>>, vector<8x256xf32>
    %2 = vector.extract_strided_slice %1 {offsets = [0, 0], sizes = [1, 256], strides = [1, 1]} : vector<8x256xf32> to vector<1x256xf32>
    %3 = vector.extract_strided_slice %1 {offsets = [1, 0], sizes = [1, 256], strides = [1, 1]} : vector<8x256xf32> to vector<1x256xf32>
    %4 = vector.extract_strided_slice %1 {offsets = [2, 0], sizes = [1, 256], strides = [1, 1]} : vector<8x256xf32> to vector<1x256xf32>
    %5 = vector.extract_strided_slice %1 {offsets = [3, 0], sizes = [1, 256], strides = [1, 1]} : vector<8x256xf32> to vector<1x256xf32>
    %c0_3 = arith.constant 0 : index
    %c0_4 = arith.constant 0 : index
    %c0_5 = arith.constant 0 : index
    %6 = vector.load %arg2[%c0_3, %c0_4, %c0_5] : memref<5x256x256xbf16, #tpu.memory_space<vmem>>, vector<1x256x256xbf16>
    %7 = vector.shape_cast %6 : vector<1x256x256xbf16> to vector<256x256xbf16>
    %c1 = arith.constant 1 : index
    %c0_6 = arith.constant 0 : index
    %c0_7 = arith.constant 0 : index
    %8 = vector.load %arg2[%c1, %c0_6, %c0_7] : memref<5x256x256xbf16, #tpu.memory_space<vmem>>, vector<1x256x256xbf16>
    %9 = vector.shape_cast %8 : vector<1x256x256xbf16> to vector<256x256xbf16>
    %10 = arith.truncf %0 : vector<2x256xf32> to vector<2x256xbf16>
    %11 = arith.extf %10 : vector<2x256xbf16> to vector<2x256xf32>
    %12 = arith.subf %0, %11 : vector<2x256xf32>
    %13 = arith.truncf %12 : vector<2x256xf32> to vector<2x256xbf16>
    %cst = arith.constant dense<0.000000e+00> : vector<2x256xf32>
    %14 = tpu.matmul %10, %7, %cst {dimension_numbers = #tpu.dot_dimension_numbers<[1], [0], [0], [1], [0, 0, 1, 1], [], []>} : vector<2x256xbf16>, vector<256x256xbf16>, vector<2x256xf32> -> vector<2x256xf32>
    %cst_8 = arith.constant dense<0.000000e+00> : vector<2x256xf32>
    %15 = tpu.matmul %13, %7, %cst_8 {dimension_numbers = #tpu.dot_dimension_numbers<[1], [0], [0], [1], [0, 0, 1, 1], [], []>} : vector<2x256xbf16>, vector<256x256xbf16>, vector<2x256xf32> -> vector<2x256xf32>
    %16 = arith.addf %14, %15 : vector<2x256xf32>
    %cst_9 = arith.constant dense<0.000000e+00> : vector<2x256xf32>
    %17 = tpu.matmul %10, %9, %cst_9 {dimension_numbers = #tpu.dot_dimension_numbers<[1], [0], [0], [1], [0, 0, 1, 1], [], []>} : vector<2x256xbf16>, vector<256x256xbf16>, vector<2x256xf32> -> vector<2x256xf32>
    %18 = arith.addf %16, %17 : vector<2x256xf32>
    %19 = vector.broadcast %2 : vector<1x256xf32> to vector<2x256xf32>
    %20 = arith.addf %18, %19 : vector<2x256xf32>
    %cst_10 = arith.constant 0.000000e+00 : f32
    %21 = vector.broadcast %cst_10 : f32 to vector<2x256xf32>
    %22 = arith.maximumf %20, %21 : vector<2x256xf32>
    %c2 = arith.constant 2 : index
    %c0_11 = arith.constant 0 : index
    %c0_12 = arith.constant 0 : index
    %23 = vector.load %arg2[%c2, %c0_11, %c0_12] : memref<5x256x256xbf16, #tpu.memory_space<vmem>>, vector<1x256x256xbf16>
    %24 = vector.shape_cast %23 : vector<1x256x256xbf16> to vector<256x256xbf16>
    %c3 = arith.constant 3 : index
    %c0_13 = arith.constant 0 : index
    %c0_14 = arith.constant 0 : index
    %25 = vector.load %arg2[%c3, %c0_13, %c0_14] : memref<5x256x256xbf16, #tpu.memory_space<vmem>>, vector<1x256x256xbf16>
    %26 = vector.shape_cast %25 : vector<1x256x256xbf16> to vector<256x256xbf16>
    %27 = arith.truncf %22 : vector<2x256xf32> to vector<2x256xbf16>
    %28 = arith.extf %27 : vector<2x256xbf16> to vector<2x256xf32>
    %29 = arith.subf %22, %28 : vector<2x256xf32>
    %30 = arith.truncf %29 : vector<2x256xf32> to vector<2x256xbf16>
    %cst_15 = arith.constant dense<0.000000e+00> : vector<2x256xf32>
    %31 = tpu.matmul %27, %24, %cst_15 {dimension_numbers = #tpu.dot_dimension_numbers<[1], [0], [0], [1], [0, 0, 1, 1], [], []>} : vector<2x256xbf16>, vector<256x256xbf16>, vector<2x256xf32> -> vector<2x256xf32>
    %cst_16 = arith.constant dense<0.000000e+00> : vector<2x256xf32>
    %32 = tpu.matmul %30, %24, %cst_16 {dimension_numbers = #tpu.dot_dimension_numbers<[1], [0], [0], [1], [0, 0, 1, 1], [], []>} : vector<2x256xbf16>, vector<256x256xbf16>, vector<2x256xf32> -> vector<2x256xf32>
    %33 = arith.addf %31, %32 : vector<2x256xf32>
    %cst_17 = arith.constant dense<0.000000e+00> : vector<2x256xf32>
    %34 = tpu.matmul %27, %26, %cst_17 {dimension_numbers = #tpu.dot_dimension_numbers<[1], [0], [0], [1], [0, 0, 1, 1], [], []>} : vector<2x256xbf16>, vector<256x256xbf16>, vector<2x256xf32> -> vector<2x256xf32>
    %35 = arith.addf %33, %34 : vector<2x256xf32>
    %36 = vector.broadcast %3 : vector<1x256xf32> to vector<2x256xf32>
    %37 = arith.addf %35, %36 : vector<2x256xf32>
    %38 = arith.addf %37, %0 : vector<2x256xf32>
    %c4 = arith.constant 4 : index
    %c0_18 = arith.constant 0 : index
    %c0_19 = arith.constant 0 : index
    %39 = vector.load %arg2[%c4, %c0_18, %c0_19] : memref<5x256x256xbf16, #tpu.memory_space<vmem>>, vector<1x256x256xbf16>
    %40 = vector.shape_cast %39 : vector<1x256x256xbf16> to vector<256x256xbf16>
    %41 = arith.truncf %38 : vector<2x256xf32> to vector<2x256xbf16>
    %42 = arith.extf %41 : vector<2x256xbf16> to vector<2x256xf32>
    %43 = arith.subf %38, %42 : vector<2x256xf32>
    %44 = arith.truncf %43 : vector<2x256xf32> to vector<2x256xbf16>
    %cst_20 = arith.constant dense<0.000000e+00> : vector<2x256xf32>
    %45 = tpu.matmul %41, %40, %cst_20 {dimension_numbers = #tpu.dot_dimension_numbers<[1], [0], [0], [1], [0, 0, 1, 1], [], []>} : vector<2x256xbf16>, vector<256x256xbf16>, vector<2x256xf32> -> vector<2x256xf32>
    %cst_21 = arith.constant dense<0.000000e+00> : vector<2x256xf32>
    %46 = tpu.matmul %44, %40, %cst_21 {dimension_numbers = #tpu.dot_dimension_numbers<[1], [0], [0], [1], [0, 0, 1, 1], [], []>} : vector<2x256xbf16>, vector<256x256xbf16>, vector<2x256xf32> -> vector<2x256xf32>
    %47 = arith.addf %45, %46 : vector<2x256xf32>
    %cst_22 = arith.constant 3.125000e-02 : f32
    %48 = vector.broadcast %cst_22 : f32 to vector<2x256xf32>
    %49 = arith.mulf %47, %48 : vector<2x256xf32>
    %50 = arith.subf %38, %49 : vector<2x256xf32>
    %51 = arith.mulf %50, %50 : vector<2x256xf32>
    %52 = arith.truncf %51 : vector<2x256xf32> to vector<2x256xbf16>
    %53 = arith.extf %52 : vector<2x256xbf16> to vector<2x256xf32>
    %54 = arith.subf %51, %53 : vector<2x256xf32>
    %55 = arith.truncf %54 : vector<2x256xf32> to vector<2x256xbf16>
    %cst_23 = arith.constant dense<0.000000e+00> : vector<2x256xf32>
    %56 = tpu.matmul %52, %40, %cst_23 {dimension_numbers = #tpu.dot_dimension_numbers<[1], [0], [0], [1], [0, 0, 1, 1], [], []>} : vector<2x256xbf16>, vector<256x256xbf16>, vector<2x256xf32> -> vector<2x256xf32>
    %cst_24 = arith.constant dense<0.000000e+00> : vector<2x256xf32>
    %57 = tpu.matmul %55, %40, %cst_24 {dimension_numbers = #tpu.dot_dimension_numbers<[1], [0], [0], [1], [0, 0, 1, 1], [], []>} : vector<2x256xbf16>, vector<256x256xbf16>, vector<2x256xf32> -> vector<2x256xf32>
    %58 = arith.addf %56, %57 : vector<2x256xf32>
    %cst_25 = arith.constant 3.125000e-02 : f32
    %59 = vector.broadcast %cst_25 : f32 to vector<2x256xf32>
    %60 = arith.mulf %58, %59 : vector<2x256xf32>
    %cst_26 = arith.constant 9.99999974E-6 : f32
    %61 = vector.broadcast %cst_26 : f32 to vector<2x256xf32>
    %62 = arith.addf %60, %61 : vector<2x256xf32>
    %63 = math.rsqrt %62 : vector<2x256xf32>
    %64 = arith.mulf %50, %63 : vector<2x256xf32>
    %65 = vector.broadcast %4 : vector<1x256xf32> to vector<2x256xf32>
    %66 = arith.mulf %64, %65 : vector<2x256xf32>
    %67 = vector.broadcast %5 : vector<1x256xf32> to vector<2x256xf32>
    %68 = arith.addf %66, %67 : vector<2x256xf32>
    %c0_27 = arith.constant 0 : index
    %c0_28 = arith.constant 0 : index
    %69 = vector.load %arg4[%c0_27, %c0_28] : memref<2x256xf32, #tpu.memory_space<vmem>>, vector<2x256xf32>
    tpu.vector_store %arg4[%c0_27, %c0_28], %68 {strides = array<i32>} : memref<2x256xf32, #tpu.memory_space<vmem>>, vector<2x256xf32>,
    return
  }
  func.func @transform_0(%arg0: i32) -> (i32, i32) {
    %c0_i32 = arith.constant 0 : i32
    %c0_i32_0 = arith.constant 0 : i32
    return %arg0, %c0_i32 : i32, i32
  }
  func.func @transform_1(%arg0: i32) -> (i32, i32, i32) {
    %c0_i32 = arith.constant 0 : i32
    %c0_i32_0 = arith.constant 0 : i32
    %c0_i32_1 = arith.constant 0 : i32
    %c0_i32_2 = arith.constant 0 : i32
    return %c0_i32, %c0_i32_0, %c0_i32_1 : i32, i32, i32
  }
  func.func @transform_2(%arg0: i32) -> (i32, i32) {
    %c0_i32 = arith.constant 0 : i32
    %c0_i32_0 = arith.constant 0 : i32
    %c0_i32_1 = arith.constant 0 : i32
    return %c0_i32, %c0_i32_0 : i32, i32
  }
  func.func @transform_3(%arg0: i32) -> (i32, i32) {
    %c0_i32 = arith.constant 0 : i32
    %c0_i32_0 = arith.constant 0 : i32
    return %arg0, %c0_i32 : i32, i32
  }
}

</mosaic_0001>

<llo_original>
// kernel: apply.1
$region0: #{apply.1}
  #allocation0 [shape = 'u32[]', space=smem, size = 0x4, offset = 0x4, fixed_abs, tag = 'smem constant byte address 0x4 - core index']
  #allocation1 [shape = 'u32[144,128]{1,0:T(1,128)}', space=vmem, size = 0x12000, scoped, tag = 'internal scratch']
  %s0 = inlined_call_operand.vmem [shape: f32[2,256], index: 0, kind: input, shape index: {}]
  %s1 = inlined_call_operand.vmem [shape: bf16[5,256,256], index: 1, kind: input, shape index: {}]
  %s2 = inlined_call_operand.vmem [shape: f32[8,256], index: 2, kind: input, shape index: {}]
  %s3 = inlined_call_operand.vmem [shape: f32[2,256], index: 3, kind: output, shape index: {}]
  %s4 = sld [smem:[#allocation0]]
  $region22: #{apply.1} parent=0
    _
  %s6 = ssub.s32 1, %s4
  %s7 = scalar_select 0, %s6, %s4
  // Predicated region
  $region2: #{apply.1} parent=0 // pred_check
    _
  $region3: #{apply.1} parent=0 // pred_check_branch
    %9 = sbr.rel (0) target = $region5
  $region4: #{apply.1} parent=0 // pred_region
    _
  $region5: #{apply.1} parent=0 // pred_fallthru
    _
  // Predicated region
  $region6: #{apply.1} parent=0 // pred_check
    _
  $region7: #{apply.1} parent=0 // pred_check_branch
    %11 = sbr.rel (0) target = $region9
  $region8: #{apply.1} parent=0 // pred_region
    _
  $region9: #{apply.1} parent=0 // pred_fallthru
    _
  // Predicated region
  $region10: #{apply.1} parent=0 // pred_check
    _
  $region11: #{apply.1} parent=0 // pred_check_branch
    %13 = sbr.rel (0) target = $region13
  $region12: #{apply.1} parent=0 // pred_region
    _
  $region13: #{apply.1} parent=0 // pred_fallthru
    _
  %v14 = vld [vmem:[%s0] sm:$0xf]
  %v15 = vld [vmem:[%s2] sm:$0xff]
  %v16 = vld [vmem:[%s2 + $0x8] sm:$0xff]
  %v17 = vld [vmem:[%s1] sm:$0xff]
  %v18 = vld [vmem:[%s1 + $0x8] sm:$0xff]
  %v19 = vld [vmem:[%s1 + $0x10] sm:$0xff]
  %v20 = vld [vmem:[%s1 + $0x18] sm:$0xff]
  %v21 = vld [vmem:[%s1 + $0x20] sm:$0xff]
  %v22 = vld [vmem:[%s1 + $0x28] sm:$0xff]
  %v23 = vld [vmem:[%s1 + $0x30] sm:$0xff]
  %v24 = vld [vmem:[%s1 + $0x38] sm:$0xff]
  %v25 = vld [vmem:[%s1 + $0x40] sm:$0xff]
  %v26 = vld [vmem:[%s1 + $0x48] sm:$0xff]
  %v27 = vld [vmem:[%s1 + $0x50] sm:$0xff]
  %v28 = vld [vmem:[%s1 + $0x58] sm:$0xff]
  %v29 = vld [vmem:[%s1 + $0x60] sm:$0xff]
  %v30 = vld [vmem:[%s1 + $0x68] sm:$0xff]
  %v31 = vld [vmem:[%s1 + $0x70] sm:$0xff]
  %v32 = vld [vmem:[%s1 + $0x78] sm:$0xff]
  %v33 = vld [vmem:[%s1 + $0x80] sm:$0xff]
  %v34 = vld [vmem:[%s1 + $0x88] sm:$0xff]
  %v35 = vld [vmem:[%s1 + $0x90] sm:$0xff]
  %v36 = vld [vmem:[%s1 + $0x98] sm:$0xff]
  %v37 = vld [vmem:[%s1 + $0xa0] sm:$0xff]
  %v38 = vld [vmem:[%s1 + $0xa8] sm:$0xff]
  %v39 = vld [vmem:[%s1 + $0xb0] sm:$0xff]
  %v40 = vld [vmem:[%s1 + $0xb8] sm:$0xff]
  %v41 = vld [vmem:[%s1 + $0xc0] sm:$0xff]
  %v42 = vld [vmem:[%s1 + $0xc8] sm:$0xff]
  %v43 = vld [vmem:[%s1 + $0xd0] sm:$0xff]
  %v44 = vld [vmem:[%s1 + $0xd8] sm:$0xff]
  %v45 = vld [vmem:[%s1 + $0xe0] sm:$0xff]
  %v46 = vld [vmem:[%s1 + $0xe8] sm:$0xff]
  %v47 = vld [vmem:[%s1 + $0xf0] sm:$0xff]
  %v48 = vld [vmem:[%s1 + $0xf8] sm:$0xff]
  %s49 = scalar_lea.vmem %s1, 256
  %v50 = vld [vmem:[%s49] sm:$0xff]
  %v51 = vld [vmem:[%s49 + $0x8] sm:$0xff]
  %v52 = vld [vmem:[%s49 + $0x10] sm:$0xff]
  %v53 = vld [vmem:[%s49 + $0x18] sm:$0xff]
  %v54 = vld [vmem:[%s49 + $0x20] sm:$0xff]
  %v55 = vld [vmem:[%s49 + $0x28] sm:$0xff]
  %v56 = vld [vmem:[%s49 + $0x30] sm:$0xff]
  %v57 = vld [vmem:[%s49 + $0x38] sm:$0xff]
  %v58 = vld [vmem:[%s49 + $0x40] sm:$0xff]
  %v59 = vld [vmem:[%s49 + $0x48] sm:$0xff]
  %v60 = vld [vmem:[%s49 + $0x50] sm:$0xff]
  %v61 = vld [vmem:[%s49 + $0x58] sm:$0xff]
  %v62 = vld [vmem:[%s49 + $0x60] sm:$0xff]
  %v63 = vld [vmem:[%s49 + $0x68] sm:$0xff]
  %v64 = vld [vmem:[%s49 + $0x70] sm:$0xff]
  %v65 = vld [vmem:[%s49 + $0x78] sm:$0xff]
  %v66 = vld [vmem:[%s49 + $0x80] sm:$0xff]
  %v67 = vld [vmem:[%s49 + $0x88] sm:$0xff]
  %v68 = vld [vmem:[%s49 + $0x90] sm:$0xff]
  %v69 = vld [vmem:[%s49 + $0x98] sm:$0xff]
  %v70 = vld [vmem:[%s49 + $0xa0] sm:$0xff]
  %v71 = vld [vmem:[%s49 + $0xa8] sm:$0xff]
  %v72 = vld [vmem:[%s49 + $0xb0] sm:$0xff]
  %v73 = vld [vmem:[%s49 + $0xb8] sm:$0xff]
  %v74 = vld [vmem:[%s49 + $0xc0] sm:$0xff]
  %v75 = vld [vmem:[%s49 + $0xc8] sm:$0xff]
  %v76 = vld [vmem:[%s49 + $0xd0] sm:$0xff]
  %v77 = vld [vmem:[%s49 + $0xd8] sm:$0xff]
  %v78 = vld [vmem:[%s49 + $0xe0] sm:$0xff]
  %v79 = vld [vmem:[%s49 + $0xe8] sm:$0xff]
  %v80 = vld [vmem:[%s49 + $0xf0] sm:$0xff]
  %v81 = vld [vmem:[%s49 + $0xf8] sm:$0xff]
  %v84 = vunpack.c.l.s4 1983009808
  %v85 = vunpack.c.0.s8 %v84
  %v86 = vlaneseq
  %v87 = vshrl.u32 %v86, 7
  %v88 = vsub.s32 %v85, %v87
  %v89 = vrot.slane %v14, %v88
  %v90 = vcombine.high %v89, %v89
  %v93 = vpack.c.bf16 %v89, %v89
  %v94 = vpack.c.bf16 %v90, %v90
  %v95 = vunpack.c.l.bf16 %v93
  %v96 = vunpack.c.l.bf16 %v94
  %v99 = vcombine.low %v95, %v96
  %v101 = vunpack.c.l.s4 1983009808
  %v102 = vunpack.c.0.s8 %v101
  %v103 = vlaneseq
  %v104 = vshrl.u32 %v103, 7
  %v105 = vsub.s32 %v102, %v104
  %v106 = vrot.slane %v99, %v105
  %v108 = vsub.f32 %v14, %v106
  %v111 = vunpack.c.l.s4 1983009808
  %v112 = vunpack.c.0.s8 %v111
  %v113 = vlaneseq
  %v114 = vshrl.u32 %v113, 7
  %v115 = vsub.s32 %v112, %v114
  %v116 = vrot.slane %v108, %v115
  %v117 = vcombine.high %v116, %v116
  %v120 = vpack.c.bf16 %v116, %v116
  %v121 = vpack.c.bf16 %v117, %v117
  %v154 = vunpack.c.l.b16 %v17
  %v155 = vunpack.c.h.b16 %v17
  %v156 = vunpack.c.l.b16 %v18
  %v157 = vunpack.c.h.b16 %v18
  %v158 = vunpack.c.l.b16 %v19
  %v159 = vunpack.c.h.b16 %v19
  %v160 = vunpack.c.l.b16 %v20
  %v161 = vunpack.c.h.b16 %v20
  %v162 = vunpack.c.l.b16 %v21
  %v163 = vunpack.c.h.b16 %v21
  %v164 = vunpack.c.l.b16 %v22
  %v165 = vunpack.c.h.b16 %v22
  %v166 = vunpack.c.l.b16 %v23
  %v167 = vunpack.c.h.b16 %v23
  %v168 = vunpack.c.l.b16 %v24
  %v169 = vunpack.c.h.b16 %v24
  %v170 = vunpack.c.l.b16 %v25
  %v171 = vunpack.c.h.b16 %v25
  %v172 = vunpack.c.l.b16 %v26
  %v173 = vunpack.c.h.b16 %v26
  %v174 = vunpack.c.l.b16 %v27
  %v175 = vunpack.c.h.b16 %v27
  %v176 = vunpack.c.l.b16 %v28
  %v177 = vunpack.c.h.b16 %v28
  %v178 = vunpack.c.l.b16 %v29
  %v179 = vunpack.c.h.b16 %v29
  %v180 = vunpack.c.l.b16 %v30
  %v181 = vunpack.c.h.b16 %v30
  %v182 = vunpack.c.l.b16 %v31
  %v183 = vunpack.c.h.b16 %v31
  %v184 = vunpack.c.l.b16 %v32
  %v185 = vunpack.c.h.b16 %v32
  %v186 = vunpack.c.l.b16 %v33
  %v187 = vunpack.c.h.b16 %v33
  %v188 = vunpack.c.l.b16 %v34
  %v189 = vunpack.c.h.b16 %v34
  %v190 = vunpack.c.l.b16 %v35
  %v191 = vunpack.c.h.b16 %v35
  %v192 = vunpack.c.l.b16 %v36
  %v193 = vunpack.c.h.b16 %v36
  %v194 = vunpack.c.l.b16 %v37
  %v195 = vunpack.c.h.b16 %v37
  %v196 = vunpack.c.l.b16 %v38
  %v197 = vunpack.c.h.b16 %v38
  %v198 = vunpack.c.l.b16 %v39
  %v199 = vunpack.c.h.b16 %v39
  %v200 = vunpack.c.l.b16 %v40
  %v201 = vunpack.c.h.b16 %v40
  %v202 = vunpack.c.l.b16 %v41
  %v203 = vunpack.c.h.b16 %v41
  %v204 = vunpack.c.l.b16 %v42
  %v205 = vunpack.c.h.b16 %v42
  %v206 = vunpack.c.l.b16 %v43
  %v207 = vunpack.c.h.b16 %v43
  %v208 = vunpack.c.l.b16 %v44
  %v209 = vunpack.c.h.b16 %v44
  %v210 = vunpack.c.l.b16 %v45
  %v211 = vunpack.c.h.b16 %v45
  %v212 = vunpack.c.l.b16 %v46
  %v213 = vunpack.c.h.b16 %v46
  %v214 = vunpack.c.l.b16 %v47
  %v215 = vunpack.c.h.b16 %v47
  %v216 = vunpack.c.l.b16 %v48
  %v217 = vunpack.c.h.b16 %v48
  %v218 = vpack.c.b16 %v156, %v154
  %v219 = vpack.c.b16 %v157, %v155
  %v220 = vpack.c.b16 %v160, %v158
  %v221 = vpack.c.b16 %v161, %v159
  %v222 = vpack.c.b16 %v164, %v162
  %v223 = vpack.c.b16 %v165, %v163
  %v224 = vpack.c.b16 %v168, %v166
  %v225 = vpack.c.b16 %v169, %v167
  %v226 = vpack.c.b16 %v172, %v170
  %v227 = vpack.c.b16 %v173, %v171
  %v228 = vpack.c.b16 %v176, %v174
  %v229 = vpack.c.b16 %v177, %v175
  %v230 = vpack.c.b16 %v180, %v178
  %v231 = vpack.c.b16 %v181, %v179
  %v232 = vpack.c.b16 %v184, %v182
  %v233 = vpack.c.b16 %v185, %v183
  %v234 = vpack.c.b16 %v188, %v186
  %v235 = vpack.c.b16 %v189, %v187
  %v236 = vpack.c.b16 %v192, %v190
  %v237 = vpack.c.b16 %v193, %v191
  %v238 = vpack.c.b16 %v196, %v194
  %v239 = vpack.c.b16 %v197, %v195
  %v240 = vpack.c.b16 %v200, %v198
  %v241 = vpack.c.b16 %v201, %v199
  %v242 = vpack.c.b16 %v204, %v202
  %v243 = vpack.c.b16 %v205, %v203
  %v244 = vpack.c.b16 %v208, %v206
  %v245 = vpack.c.b16 %v209, %v207
  %v246 = vpack.c.b16 %v212, %v210
  %v247 = vpack.c.b16 %v213, %v211
  %v248 = vpack.c.b16 %v216, %v214
  %v249 = vpack.c.b16 %v217, %v215
  %282 = vmatprep.subr.bf16.mxu0 %v219
  %283 = vmatpush1.bf16.msra.mxu0 %v218
  %284 = vmatprep.subr.bf16.mxu0 %v221
  %285 = vmatpush1.bf16.msra.mxu0 %v220
  %286 = vmatprep.subr.bf16.mxu0 %v223
  %287 = vmatpush1.bf16.msra.mxu0 %v222
  %288 = vmatprep.subr.bf16.mxu0 %v225
  %289 = vmatpush1.bf16.msra.mxu0 %v224
  %290 = vmatprep.subr.bf16.mxu0 %v227
  %291 = vmatpush1.bf16.msra.mxu0 %v226
  %292 = vmatprep.subr.bf16.mxu0 %v229
  %293 = vmatpush1.bf16.msra.mxu0 %v228
  %294 = vmatprep.subr.bf16.mxu0 %v231
  %295 = vmatpush1.bf16.msra.mxu0 %v230
  %296 = vmatprep.subr.bf16.mxu0 %v233
  %297 = vmatpush1.bf16.msra.mxu0 %v232
  %298 = vmatprep.subr.bf16.mxu0 %v235
  %299 = vmatpush1.bf16.msra.mxu0 %v234
  %300 = vmatprep.subr.bf16.mxu0 %v237
  %301 = vmatpush1.bf16.msra.mxu0 %v236
  %302 = vmatprep.subr.bf16.mxu0 %v239
  %303 = vmatpush1.bf16.msra.mxu0 %v238
  %304 = vmatprep.subr.bf16.mxu0 %v241
  %305 = vmatpush1.bf16.msra.mxu0 %v240
  %306 = vmatprep.subr.bf16.mxu0 %v243
  %307 = vmatpush1.bf16.msra.mxu0 %v242
  %308 = vmatprep.subr.bf16.mxu0 %v245
  %309 = vmatpush1.bf16.msra.mxu0 %v244
  %310 = vmatprep.subr.bf16.mxu0 %v247
  %311 = vmatpush1.bf16.msra.mxu0 %v246
  %312 = vmatprep.subr.bf16.mxu0 %v249
  %313 = vmatpush1.bf16.msra.mxu0 %v248
  %314 = vmatprep.mubr.bf16.mxu0 %v121
  %315 = vmatmul.mubr.bf16.gmra.mrb[0].mxu0 %v120
  %v316 = vpop.f32.mrb[0].mxu0
  %v317 = vadd.f32 0.0, %v316
  %v318 = vpop.f32.mrb[0].mxu0
  %v319 = vadd.f32 0.0, %v318
  %v320 = vpop.f32.mrb[0].mxu0
  %v321 = vpop.f32.mrb[0].mxu0
  %322 = vdwg.mxu0
  %323 = vmatprep.subr.bf16.mxu0 %v219
  %324 = vmatpush1.bf16.msra.mxu0 %v218
  %325 = vmatprep.subr.bf16.mxu0 %v221
  %326 = vmatpush1.bf16.msra.mxu0 %v220
  %327 = vmatprep.subr.bf16.mxu0 %v223
  %328 = vmatpush1.bf16.msra.mxu0 %v222
  %329 = vmatprep.subr.bf16.mxu0 %v225
  %330 = vmatpush1.bf16.msra.mxu0 %v224
  %331 = vmatprep.subr.bf16.mxu0 %v227
  %332 = vmatpush1.bf16.msra.mxu0 %v226
  %333 = vmatprep.subr.bf16.mxu0 %v229
  %334 = vmatpush1.bf16.msra.mxu0 %v228
  %335 = vmatprep.subr.bf16.mxu0 %v231
  %336 = vmatpush1.bf16.msra.mxu0 %v230
  %337 = vmatprep.subr.bf16.mxu0 %v233
  %338 = vmatpush1.bf16.msra.mxu0 %v232
  %339 = vmatprep.subr.bf16.mxu0 %v235
  %340 = vmatpush1.bf16.msra.mxu0 %v234
  %341 = vmatprep.subr.bf16.mxu0 %v237
  %342 = vmatpush1.bf16.msra.mxu0 %v236
  %343 = vmatprep.subr.bf16.mxu0 %v239
  %344 = vmatpush1.bf16.msra.mxu0 %v238
  %345 = vmatprep.subr.bf16.mxu0 %v241
  %346 = vmatpush1.bf16.msra.mxu0 %v240
  %347 = vmatprep.subr.bf16.mxu0 %v243
  %348 = vmatpush1.bf16.msra.mxu0 %v242
  %349 = vmatprep.subr.bf16.mxu0 %v245
  %350 = vmatpush1.bf16.msra.mxu0 %v244
  %351 = vmatprep.subr.bf16.mxu0 %v247
  %352 = vmatpush1.bf16.msra.mxu0 %v246
  %353 = vmatprep.subr.bf16.mxu0 %v249
  %354 = vmatpush1.bf16.msra.mxu0 %v248
  %355 = vmatprep.mubr.bf16.mxu0 %v94
  %356 = vmatmul.mubr.bf16.gmra.mrb[0].mxu0 %v93
  %v357 = vpop.f32.mrb[0].mxu0
  %v358 = vadd.f32 %v317, %v357
  %v359 = vpop.f32.mrb[0].mxu0
  %v360 = vadd.f32 %v319, %v359
  %v361 = vpop.f32.mrb[0].mxu0
  %v362 = vpop.f32.mrb[0].mxu0
  %363 = vdwg.mxu0
  %v396 = vunpack.c.l.b16 %v50
  %v397 = vunpack.c.h.b16 %v50
  %v398 = vunpack.c.l.b16 %v51
  %v399 = vunpack.c.h.b16 %v51
  %v400 = vunpack.c.l.b16 %v52
  %v401 = vunpack.c.h.b16 %v52
  %v402 = vunpack.c.l.b16 %v53
  %v403 = vunpack.c.h.b16 %v53
  %v404 = vunpack.c.l.b16 %v54
  %v405 = vunpack.c.h.b16 %v54
  %v406 = vunpack.c.l.b16 %v55
  %v407 = vunpack.c.h.b16 %v55
  %v408 = vunpack.c.l.b16 %v56
  %v409 = vunpack.c.h.b16 %v56
  %v410 = vunpack.c.l.b16 %v57
  %v411 = vunpack.c.h.b16 %v57
  %v412 = vunpack.c.l.b16 %v58
  %v413 = vunpack.c.h.b16 %v58
  %v414 = vunpack.c.l.b16 %v59
  %v415 = vunpack.c.h.b16 %v59
  %v416 = vunpack.c.l.b16 %v60
  %v417 = vunpack.c.h.b16 %v60
  %v418 = vunpack.c.l.b16 %v61
  %v419 = vunpack.c.h.b16 %v61
  %v420 = vunpack.c.l.b16 %v62
  %v421 = vunpack.c.h.b16 %v62
  %v422 = vunpack.c.l.b16 %v63
  %v423 = vunpack.c.h.b16 %v63
  %v424 = vunpack.c.l.b16 %v64
  %v425 = vunpack.c.h.b16 %v64
  %v426 = vunpack.c.l.b16 %v65
  %v427 = vunpack.c.h.b16 %v65
  %v428 = vunpack.c.l.b16 %v66
  %v429 = vunpack.c.h.b16 %v66
  %v430 = vunpack.c.l.b16 %v67
  %v431 = vunpack.c.h.b16 %v67
  %v432 = vunpack.c.l.b16 %v68
  %v433 = vunpack.c.h.b16 %v68
  %v434 = vunpack.c.l.b16 %v69
  %v435 = vunpack.c.h.b16 %v69
  %v436 = vunpack.c.l.b16 %v70
  %v437 = vunpack.c.h.b16 %v70
  %v438 = vunpack.c.l.b16 %v71
  %v439 = vunpack.c.h.b16 %v71
  %v440 = vunpack.c.l.b16 %v72
  %v441 = vunpack.c.h.b16 %v72
  %v442 = vunpack.c.l.b16 %v73
  %v443 = vunpack.c.h.b16 %v73
  %v444 = vunpack.c.l.b16 %v74
  %v445 = vunpack.c.h.b16 %v74
  %v446 = vunpack.c.l.b16 %v75
  %v447 = vunpack.c.h.b16 %v75
  %v448 = vunpack.c.l.b16 %v76
  %v449 = vunpack.c.h.b16 %v76
  %v450 = vunpack.c.l.b16 %v77
  %v451 = vunpack.c.h.b16 %v77
  %v452 = vunpack.c.l.b16 %v78
  %v453 = vunpack.c.h.b16 %v78
  %v454 = vunpack.c.l.b16 %v79
  %v455 = vunpack.c.h.b16 %v79
  %v456 = vunpack.c.l.b16 %v80
  %v457 = vunpack.c.h.b16 %v80
  %v458 = vunpack.c.l.b16 %v81
  %v459 = vunpack.c.h.b16 %v81
  %v460 = vpack.c.b16 %v398, %v396
  %v461 = vpack.c.b16 %v399, %v397
  %v462 = vpack.c.b16 %v402, %v400
  %v463 = vpack.c.b16 %v403, %v401
  %v464 = vpack.c.b16 %v406, %v404
  %v465 = vpack.c.b16 %v407, %v405
  %v466 = vpack.c.b16 %v410, %v408
  %v467 = vpack.c.b16 %v411, %v409
  %v468 = vpack.c.b16 %v414, %v412
  %v469 = vpack.c.b16 %v415, %v413
  %v470 = vpack.c.b16 %v418, %v416
  %v471 = vpack.c.b16 %v419, %v417
  %v472 = vpack.c.b16 %v422, %v420
  %v473 = vpack.c.b16 %v423, %v421
  %v474 = vpack.c.b16 %v426, %v424
  %v475 = vpack.c.b16 %v427, %v425
  %v476 = vpack.c.b16 %v430, %v428
  %v477 = vpack.c.b16 %v431, %v429
  %v478 = vpack.c.b16 %v434, %v432
  %v479 = vpack.c.b16 %v435, %v433
  %v480 = vpack.c.b16 %v438, %v436
  %v481 = vpack.c.b16 %v439, %v437
  %v482 = vpack.c.b16 %v442, %v440
  %v483 = vpack.c.b16 %v443, %v441
  %v484 = vpack.c.b16 %v446, %v444
  %v485 = vpack.c.b16 %v447, %v445
  %v486 = vpack.c.b16 %v450, %v448
  %v487 = vpack.c.b16 %v451, %v449
  %v488 = vpack.c.b16 %v454, %v452
  %v489 = vpack.c.b16 %v455, %v453
  %v490 = vpack.c.b16 %v458, %v456
  %v491 = vpack.c.b16 %v459, %v457
  %524 = vmatprep.subr.bf16.mxu0 %v461
  %525 = vmatpush1.bf16.msra.mxu0 %v460
  %526 = vmatprep.subr.bf16.mxu0 %v463
  %527 = vmatpush1.bf16.msra.mxu0 %v462
  %528 = vmatprep.subr.bf16.mxu0 %v465
  %529 = vmatpush1.bf16.msra.mxu0 %v464
  %530 = vmatprep.subr.bf16.mxu0 %v467
  %531 = vmatpush1.bf16.msra.mxu0 %v466
  %532 = vmatprep.subr.bf16.mxu0 %v469
  %533 = vmatpush1.bf16.msra.mxu0 %v468
  %534 = vmatprep.subr.bf16.mxu0 %v471
  %535 = vmatpush1.bf16.msra.mxu0 %v470
  %536 = vmatprep.subr.bf16.mxu0 %v473
  %537 = vmatpush1.bf16.msra.mxu0 %v472
  %538 = vmatprep.subr.bf16.mxu0 %v475
  %539 = vmatpush1.bf16.msra.mxu0 %v474
  %540 = vmatprep.subr.bf16.mxu0 %v477
  %541 = vmatpush1.bf16.msra.mxu0 %v476
  %542 = vmatprep.subr.bf16.mxu0 %v479
  %543 = vmatpush1.bf16.msra.mxu0 %v478
  %544 = vmatprep.subr.bf16.mxu0 %v481
  %545 = vmatpush1.bf16.msra.mxu0 %v480
  %546 = vmatprep.subr.bf16.mxu0 %v483
  %547 = vmatpush1.bf16.msra.mxu0 %v482
  %548 = vmatprep.subr.bf16.mxu0 %v485
  %549 = vmatpush1.bf16.msra.mxu0 %v484
  %550 = vmatprep.subr.bf16.mxu0 %v487
  %551 = vmatpush1.bf16.msra.mxu0 %v486
  %552 = vmatprep.subr.bf16.mxu0 %v489
  %553 = vmatpush1.bf16.msra.mxu0 %v488
  %554 = vmatprep.subr.bf16.mxu0 %v491
  %555 = vmatpush1.bf16.msra.mxu0 %v490
  %556 = vmatprep.mubr.bf16.mxu0 %v94
  %557 = vmatmul.mubr.bf16.gmra.mrb[0].mxu0 %v93
  %v558 = vpop.f32.mrb[0].mxu0
  %v559 = vadd.f32 0.0, %v558
  %v560 = vpop.f32.mrb[0].mxu0
  %v561 = vadd.f32 0.0, %v560
  %v562 = vpop.f32.mrb[0].mxu0
  %v563 = vpop.f32.mrb[0].mxu0
  %564 = vdwg.mxu0
  %v565 = vadd.f32 %v358, %v559
  %v566 = vadd.f32 %v360, %v561
  %v567 = vlaneseq
  %v568 = vshrl.u32 %v567, 7
  %v569 = vsub.s32 0, %v568
  %v570 = vrot.slane %v15, %v569
  %v571 = vlaneseq
  %v572 = vshrl.u32 %v571, 7
  %v573 = vsub.s32 0, %v572
  %v574 = vrot.slane %v16, %v573
  %v575 = vadd.f32 %v565, %v570
  %v576 = vadd.f32 %v566, %v574
  %v577 = vmax.f32 %v575, 0.0
  %v578 = vmax.f32 %v576, 0.0
  %s579 = scalar_lea.vmem %s1, 512
  %v580 = vld [vmem:[%s579] sm:$0xff]
  %v581 = vld [vmem:[%s579 + $0x8] sm:$0xff]
  %v582 = vld [vmem:[%s579 + $0x10] sm:$0xff]
  %v583 = vld [vmem:[%s579 + $0x18] sm:$0xff]
  %v584 = vld [vmem:[%s579 + $0x20] sm:$0xff]
  %v585 = vld [vmem:[%s579 + $0x28] sm:$0xff]
  %v586 = vld [vmem:[%s579 + $0x30] sm:$0xff]
  %v587 = vld [vmem:[%s579 + $0x38] sm:$0xff]
  %v588 = vld [vmem:[%s579 + $0x40] sm:$0xff]
  %v589 = vld [vmem:[%s579 + $0x48] sm:$0xff]
  %v590 = vld [vmem:[%s579 + $0x50] sm:$0xff]
  %v591 = vld [vmem:[%s579 + $0x58] sm:$0xff]
  %v592 = vld [vmem:[%s579 + $0x60] sm:$0xff]
  %v593 = vld [vmem:[%s579 + $0x68] sm:$0xff]
  %v594 = vld [vmem:[%s579 + $0x70] sm:$0xff]
  %v595 = vld [vmem:[%s579 + $0x78] sm:$0xff]
  %v596 = vld [vmem:[%s579 + $0x80] sm:$0xff]
  %v597 = vld [vmem:[%s579 + $0x88] sm:$0xff]
  %v598 = vld [vmem:[%s579 + $0x90] sm:$0xff]
  %v599 = vld [vmem:[%s579 + $0x98] sm:$0xff]
  %v600 = vld [vmem:[%s579 + $0xa0] sm:$0xff]
  %v601 = vld [vmem:[%s579 + $0xa8] sm:$0xff]
  %v602 = vld [vmem:[%s579 + $0xb0] sm:$0xff]
  %v603 = vld [vmem:[%s579 + $0xb8] sm:$0xff]
  %v604 = vld [vmem:[%s579 + $0xc0] sm:$0xff]
  %v605 = vld [vmem:[%s579 + $0xc8] sm:$0xff]
  %v606 = vld [vmem:[%s579 + $0xd0] sm:$0xff]
  %v607 = vld [vmem:[%s579 + $0xd8] sm:$0xff]
  %v608 = vld [vmem:[%s579 + $0xe0] sm:$0xff]
  %v609 = vld [vmem:[%s579 + $0xe8] sm:$0xff]
  %v610 = vld [vmem:[%s579 + $0xf0] sm:$0xff]
  %v611 = vld [vmem:[%s579 + $0xf8] sm:$0xff]
  %s612 = scalar_lea.vmem %s1, 768
  %v613 = vld [vmem:[%s612] sm:$0xff]
  %v614 = vld [vmem:[%s612 + $0x8] sm:$0xff]
  %v615 = vld [vmem:[%s612 + $0x10] sm:$0xff]
  %v616 = vld [vmem:[%s612 + $0x18] sm:$0xff]
  %v617 = vld [vmem:[%s612 + $0x20] sm:$0xff]
  %v618 = vld [vmem:[%s612 + $0x28] sm:$0xff]
  %v619 = vld [vmem:[%s612 + $0x30] sm:$0xff]
  %v620 = vld [vmem:[%s612 + $0x38] sm:$0xff]
  %v621 = vld [vmem:[%s612 + $0x40] sm:$0xff]
  %v622 = vld [vmem:[%s612 + $0x48] sm:$0xff]
  %v623 = vld [vmem:[%s612 + $0x50] sm:$0xff]
  %v624 = vld [vmem:[%s612 + $0x58] sm:$0xff]
  %v625 = vld [vmem:[%s612 + $0x60] sm:$0xff]
  %v626 = vld [vmem:[%s612 + $0x68] sm:$0xff]
  %v627 = vld [vmem:[%s612 + $0x70] sm:$0xff]
  %v628 = vld [vmem:[%s612 + $0x78] sm:$0xff]
  %v629 = vld [vmem:[%s612 + $0x80] sm:$0xff]
  %v630 = vld [vmem:[%s612 + $0x88] sm:$0xff]
  %v631 = vld [vmem:[%s612 + $0x90] sm:$0xff]
  %v632 = vld [vmem:[%s612 + $0x98] sm:$0xff]
  %v633 = vld [vmem:[%s612 + $0xa0] sm:$0xff]
  %v634 = vld [vmem:[%s612 + $0xa8] sm:$0xff]
  %v635 = vld [vmem:[%s612 + $0xb0] sm:$0xff]
  %v636 = vld [vmem:[%s612 + $0xb8] sm:$0xff]
  %v637 = vld [vmem:[%s612 + $0xc0] sm:$0xff]
  %v638 = vld [vmem:[%s612 + $0xc8] sm:$0xff]
  %v639 = vld [vmem:[%s612 + $0xd0] sm:$0xff]
  %v640 = vld [vmem:[%s612 + $0xd8] sm:$0xff]
  %v641 = vld [vmem:[%s612 + $0xe0] sm:$0xff]
  %v642 = vld [vmem:[%s612 + $0xe8] sm:$0xff]
  %v643 = vld [vmem:[%s612 + $0xf0] sm:$0xff]
  %v644 = vld [vmem:[%s612 + $0xf8] sm:$0xff]
  %v645 = vpack.c.bf16 %v577, %v577
  %v646 = vpack.c.bf16 %v578, %v578
  %v647 = vunpack.c.l.bf16 %v645
  %v648 = vunpack.c.l.bf16 %v646
  %v649 = vsub.f32 %v577, %v647
  %v650 = vsub.f32 %v578, %v648
  %v651 = vpack.c.bf16 %v649, %v649
  %v652 = vpack.c.bf16 %v650, %v650
  %v685 = vunpack.c.l.b16 %v580
  %v686 = vunpack.c.h.b16 %v580
  %v687 = vunpack.c.l.b16 %v581
  %v688 = vunpack.c.h.b16 %v581
  %v689 = vunpack.c.l.b16 %v582
  %v690 = vunpack.c.h.b16 %v582
  %v691 = vunpack.c.l.b16 %v583
  %v692 = vunpack.c.h.b16 %v583
  %v693 = vunpack.c.l.b16 %v584
  %v694 = vunpack.c.h.b16 %v584
  %v695 = vunpack.c.l.b16 %v585
  %v696 = vunpack.c.h.b16 %v585
  %v697 = vunpack.c.l.b16 %v586
  %v698 = vunpack.c.h.b16 %v586
  %v699 = vunpack.c.l.b16 %v587
  %v700 = vunpack.c.h.b16 %v587
  %v701 = vunpack.c.l.b16 %v588
  %v702 = vunpack.c.h.b16 %v588
  %v703 = vunpack.c.l.b16 %v589
  %v704 = vunpack.c.h.b16 %v589
  %v705 = vunpack.c.l.b16 %v590
  %v706 = vunpack.c.h.b16 %v590
  %v707 = vunpack.c.l.b16 %v591
  %v708 = vunpack.c.h.b16 %v591
  %v709 = vunpack.c.l.b16 %v592
  %v710 = vunpack.c.h.b16 %v592
  %v711 = vunpack.c.l.b16 %v593
  %v712 = vunpack.c.h.b16 %v593
  %v713 = vunpack.c.l.b16 %v594
  %v714 = vunpack.c.h.b16 %v594
  %v715 = vunpack.c.l.b16 %v595
  %v716 = vunpack.c.h.b16 %v595
  %v717 = vunpack.c.l.b16 %v596
  %v718 = vunpack.c.h.b16 %v596
  %v719 = vunpack.c.l.b16 %v597
  %v720 = vunpack.c.h.b16 %v597
  %v721 = vunpack.c.l.b16 %v598
  %v722 = vunpack.c.h.b16 %v598
  %v723 = vunpack.c.l.b16 %v599
  %v724 = vunpack.c.h.b16 %v599
  %v725 = vunpack.c.l.b16 %v600
  %v726 = vunpack.c.h.b16 %v600
  %v727 = vunpack.c.l.b16 %v601
  %v728 = vunpack.c.h.b16 %v601
  %v729 = vunpack.c.l.b16 %v602
  %v730 = vunpack.c.h.b16 %v602
  %v731 = vunpack.c.l.b16 %v603
  %v732 = vunpack.c.h.b16 %v603
  %v733 = vunpack.c.l.b16 %v604
  %v734 = vunpack.c.h.b16 %v604
  %v735 = vunpack.c.l.b16 %v605
  %v736 = vunpack.c.h.b16 %v605
  %v737 = vunpack.c.l.b16 %v606
  %v738 = vunpack.c.h.b16 %v606
  %v739 = vunpack.c.l.b16 %v607
  %v740 = vunpack.c.h.b16 %v607
  %v741 = vunpack.c.l.b16 %v608
  %v742 = vunpack.c.h.b16 %v608
  %v743 = vunpack.c.l.b16 %v609
  %v744 = vunpack.c.h.b16 %v609
  %v745 = vunpack.c.l.b16 %v610
  %v746 = vunpack.c.h.b16 %v610
  %v747 = vunpack.c.l.b16 %v611
  %v748 = vunpack.c.h.b16 %v611
  %v749 = vpack.c.b16 %v687, %v685
  %v750 = vpack.c.b16 %v688, %v686
  %v751 = vpack.c.b16 %v691, %v689
  %v752 = vpack.c.b16 %v692, %v690
  %v753 = vpack.c.b16 %v695, %v693
  %v754 = vpack.c.b16 %v696, %v694
  %v755 = vpack.c.b16 %v699, %v697
  %v756 = vpack.c.b16 %v700, %v698
  %v757 = vpack.c.b16 %v703, %v701
  %v758 = vpack.c.b16 %v704, %v702
  %v759 = vpack.c.b16 %v707, %v705
  %v760 = vpack.c.b16 %v708, %v706
  %v761 = vpack.c.b16 %v711, %v709
  %v762 = vpack.c.b16 %v712, %v710
  %v763 = vpack.c.b16 %v715, %v713
  %v764 = vpack.c.b16 %v716, %v714
  %v765 = vpack.c.b16 %v719, %v717
  %v766 = vpack.c.b16 %v720, %v718
  %v767 = vpack.c.b16 %v723, %v721
  %v768 = vpack.c.b16 %v724, %v722
  %v769 = vpack.c.b16 %v727, %v725
  %v770 = vpack.c.b16 %v728, %v726
  %v771 = vpack.c.b16 %v731, %v729
  %v772 = vpack.c.b16 %v732, %v730
  %v773 = vpack.c.b16 %v735, %v733
  %v774 = vpack.c.b16 %v736, %v734
  %v775 = vpack.c.b16 %v739, %v737
  %v776 = vpack.c.b16 %v740, %v738
  %v777 = vpack.c.b16 %v743, %v741
  %v778 = vpack.c.b16 %v744, %v742
  %v779 = vpack.c.b16 %v747, %v745
  %v780 = vpack.c.b16 %v748, %v746
  %813 = vmatprep.subr.bf16.mxu0 %v750
  %814 = vmatpush1.bf16.msra.mxu0 %v749
  %815 = vmatprep.subr.bf16.mxu0 %v752
  %816 = vmatpush1.bf16.msra.mxu0 %v751
  %817 = vmatprep.subr.bf16.mxu0 %v754
  %818 = vmatpush1.bf16.msra.mxu0 %v753
  %819 = vmatprep.subr.bf16.mxu0 %v756
  %820 = vmatpush1.bf16.msra.mxu0 %v755
  %821 = vmatprep.subr.bf16.mxu0 %v758
  %822 = vmatpush1.bf16.msra.mxu0 %v757
  %823 = vmatprep.subr.bf16.mxu0 %v760
  %824 = vmatpush1.bf16.msra.mxu0 %v759
  %825 = vmatprep.subr.bf16.mxu0 %v762
  %826 = vmatpush1.bf16.msra.mxu0 %v761
  %827 = vmatprep.subr.bf16.mxu0 %v764
  %828 = vmatpush1.bf16.msra.mxu0 %v763
  %829 = vmatprep.subr.bf16.mxu0 %v766
  %830 = vmatpush1.bf16.msra.mxu0 %v765
  %831 = vmatprep.subr.bf16.mxu0 %v768
  %832 = vmatpush1.bf16.msra.mxu0 %v767
  %833 = vmatprep.subr.bf16.mxu0 %v770
  %834 = vmatpush1.bf16.msra.mxu0 %v769
  %835 = vmatprep.subr.bf16.mxu0 %v772
  %836 = vmatpush1.bf16.msra.mxu0 %v771
  %837 = vmatprep.subr.bf16.mxu0 %v774
  %838 = vmatpush1.bf16.msra.mxu0 %v773
  %839 = vmatprep.subr.bf16.mxu0 %v776
  %840 = vmatpush1.bf16.msra.mxu0 %v775
  %841 = vmatprep.subr.bf16.mxu0 %v778
  %842 = vmatpush1.bf16.msra.mxu0 %v777
  %843 = vmatprep.subr.bf16.mxu0 %v780
  %844 = vmatpush1.bf16.msra.mxu0 %v779
  %845 = vmatprep.mubr.bf16.mxu0 %v652
  %846 = vmatmul.mubr.bf16.gmra.mrb[0].mxu0 %v651
  %v847 = vpop.f32.mrb[0].mxu0
  %v848 = vadd.f32 0.0, %v847
  %v849 = vpop.f32.mrb[0].mxu0
  %v850 = vadd.f32 0.0, %v849
  %v851 = vpop.f32.mrb[0].mxu0
  %v852 = vpop.f32.mrb[0].mxu0
  %853 = vdwg.mxu0
  %854 = vmatprep.subr.bf16.mxu0 %v750
  %855 = vmatpush1.bf16.msra.mxu0 %v749
  %856 = vmatprep.subr.bf16.mxu0 %v752
  %857 = vmatpush1.bf16.msra.mxu0 %v751
  %858 = vmatprep.subr.bf16.mxu0 %v754
  %859 = vmatpush1.bf16.msra.mxu0 %v753
  %860 = vmatprep.subr.bf16.mxu0 %v756
  %861 = vmatpush1.bf16.msra.mxu0 %v755
  %862 = vmatprep.subr.bf16.mxu0 %v758
  %863 = vmatpush1.bf16.msra.mxu0 %v757
  %864 = vmatprep.subr.bf16.mxu0 %v760
  %865 = vmatpush1.bf16.msra.mxu0 %v759
  %866 = vmatprep.subr.bf16.mxu0 %v762
  %867 = vmatpush1.bf16.msra.mxu0 %v761
  %868 = vmatprep.subr.bf16.mxu0 %v764
  %869 = vmatpush1.bf16.msra.mxu0 %v763
  %870 = vmatprep.subr.bf16.mxu0 %v766
  %871 = vmatpush1.bf16.msra.mxu0 %v765
  %872 = vmatprep.subr.bf16.mxu0 %v768
  %873 = vmatpush1.bf16.msra.mxu0 %v767
  %874 = vmatprep.subr.bf16.mxu0 %v770
  %875 = vmatpush1.bf16.msra.mxu0 %v769
  %876 = vmatprep.subr.bf16.mxu0 %v772
  %877 = vmatpush1.bf16.msra.mxu0 %v771
  %878 = vmatprep.subr.bf16.mxu0 %v774
  %879 = vmatpush1.bf16.msra.mxu0 %v773
  %880 = vmatprep.subr.bf16.mxu0 %v776
  %881 = vmatpush1.bf16.msra.mxu0 %v775
  %882 = vmatprep.subr.bf16.mxu0 %v778
  %883 = vmatpush1.bf16.msra.mxu0 %v777
  %884 = vmatprep.subr.bf16.mxu0 %v780
  %885 = vmatpush1.bf16.msra.mxu0 %v779
  %886 = vmatprep.mubr.bf16.mxu0 %v646
  %887 = vmatmul.mubr.bf16.gmra.mrb[0].mxu0 %v645
  %v888 = vpop.f32.mrb[0].mxu0
  %v889 = vadd.f32 %v848, %v888
  %v890 = vpop.f32.mrb[0].mxu0
  %v891 = vadd.f32 %v850, %v890
  %v892 = vpop.f32.mrb[0].mxu0
  %v893 = vpop.f32.mrb[0].mxu0
  %894 = vdwg.mxu0
  %v927 = vunpack.c.l.b16 %v613
  %v928 = vunpack.c.h.b16 %v613
  %v929 = vunpack.c.l.b16 %v614
  %v930 = vunpack.c.h.b16 %v614
  %v931 = vunpack.c.l.b16 %v615
  %v932 = vunpack.c.h.b16 %v615
  %v933 = vunpack.c.l.b16 %v616
  %v934 = vunpack.c.h.b16 %v616
  %v935 = vunpack.c.l.b16 %v617
  %v936 = vunpack.c.h.b16 %v617
  %v937 = vunpack.c.l.b16 %v618
  %v938 = vunpack.c.h.b16 %v618
  %v939 = vunpack.c.l.b16 %v619
  %v940 = vunpack.c.h.b16 %v619
  %v941 = vunpack.c.l.b16 %v620
  %v942 = vunpack.c.h.b16 %v620
  %v943 = vunpack.c.l.b16 %v621
  %v944 = vunpack.c.h.b16 %v621
  %v945 = vunpack.c.l.b16 %v622
  %v946 = vunpack.c.h.b16 %v622
  %v947 = vunpack.c.l.b16 %v623
  %v948 = vunpack.c.h.b16 %v623
  %v949 = vunpack.c.l.b16 %v624
  %v950 = vunpack.c.h.b16 %v624
  %v951 = vunpack.c.l.b16 %v625
  %v952 = vunpack.c.h.b16 %v625
  %v953 = vunpack.c.l.b16 %v626
  %v954 = vunpack.c.h.b16 %v626
  %v955 = vunpack.c.l.b16 %v627
  %v956 = vunpack.c.h.b16 %v627
  %v957 = vunpack.c.l.b16 %v628
  %v958 = vunpack.c.h.b16 %v628
  %v959 = vunpack.c.l.b16 %v629
  %v960 = vunpack.c.h.b16 %v629
  %v961 = vunpack.c.l.b16 %v630
  %v962 = vunpack.c.h.b16 %v630
  %v963 = vunpack.c.l.b16 %v631
  %v964 = vunpack.c.h.b16 %v631
  %v965 = vunpack.c.l.b16 %v632
  %v966 = vunpack.c.h.b16 %v632
  %v967 = vunpack.c.l.b16 %v633
  %v968 = vunpack.c.h.b16 %v633
  %v969 = vunpack.c.l.b16 %v634
  %v970 = vunpack.c.h.b16 %v634
  %v971 = vunpack.c.l.b16 %v635
  %v972 = vunpack.c.h.b16 %v635
  %v973 = vunpack.c.l.b16 %v636
  %v974 = vunpack.c.h.b16 %v636
  %v975 = vunpack.c.l.b16 %v637
  %v976 = vunpack.c.h.b16 %v637
  %v977 = vunpack.c.l.b16 %v638
  %v978 = vunpack.c.h.b16 %v638
  %v979 = vunpack.c.l.b16 %v639
  %v980 = vunpack.c.h.b16 %v639
  %v981 = vunpack.c.l.b16 %v640
  %v982 = vunpack.c.h.b16 %v640
  %v983 = vunpack.c.l.b16 %v641
  %v984 = vunpack.c.h.b16 %v641
  %v985 = vunpack.c.l.b16 %v642
  %v986 = vunpack.c.h.b16 %v642
  %v987 = vunpack.c.l.b16 %v643
  %v988 = vunpack.c.h.b16 %v643
  %v989 = vunpack.c.l.b16 %v644
  %v990 = vunpack.c.h.b16 %v644
  %v991 = vpack.c.b16 %v929, %v927
  %v992 = vpack.c.b16 %v930, %v928
  %v993 = vpack.c.b16 %v933, %v931
  %v994 = vpack.c.b16 %v934, %v932
  %v995 = vpack.c.b16 %v937, %v935
  %v996 = vpack.c.b16 %v938, %v936
  %v997 = vpack.c.b16 %v941, %v939
  %v998 = vpack.c.b16 %v942, %v940
  %v999 = vpack.c.b16 %v945, %v943
  %v1000 = vpack.c.b16 %v946, %v944
  %v1001 = vpack.c.b16 %v949, %v947
  %v1002 = vpack.c.b16 %v950, %v948
  %v1003 = vpack.c.b16 %v953, %v951
  %v1004 = vpack.c.b16 %v954, %v952
  %v1005 = vpack.c.b16 %v957, %v955
  %v1006 = vpack.c.b16 %v958, %v956
  %v1007 = vpack.c.b16 %v961, %v959
  %v1008 = vpack.c.b16 %v962, %v960
  %v1009 = vpack.c.b16 %v965, %v963
  %v1010 = vpack.c.b16 %v966, %v964
  %v1011 = vpack.c.b16 %v969, %v967
  %v1012 = vpack.c.b16 %v970, %v968
  %v1013 = vpack.c.b16 %v973, %v971
  %v1014 = vpack.c.b16 %v974, %v972
  %v1015 = vpack.c.b16 %v977, %v975
  %v1016 = vpack.c.b16 %v978, %v976
  %v1017 = vpack.c.b16 %v981, %v979
  %v1018 = vpack.c.b16 %v982, %v980
  %v1019 = vpack.c.b16 %v985, %v983
  %v1020 = vpack.c.b16 %v986, %v984
  %v1021 = vpack.c.b16 %v989, %v987
  %v1022 = vpack.c.b16 %v990, %v988
  %1055 = vmatprep.subr.bf16.mxu0 %v992
  %1056 = vmatpush1.bf16.msra.mxu0 %v991
  %1057 = vmatprep.subr.bf16.mxu0 %v994
  %1058 = vmatpush1.bf16.msra.mxu0 %v993
  %1059 = vmatprep.subr.bf16.mxu0 %v996
  %1060 = vmatpush1.bf16.msra.mxu0 %v995
  %1061 = vmatprep.subr.bf16.mxu0 %v998
  %1062 = vmatpush1.bf16.msra.mxu0 %v997
  %1063 = vmatprep.subr.bf16.mxu0 %v1000
  %1064 = vmatpush1.bf16.msra.mxu0 %v999
  %1065 = vmatprep.subr.bf16.mxu0 %v1002
  %1066 = vmatpush1.bf16.msra.mxu0 %v1001
  %1067 = vmatprep.subr.bf16.mxu0 %v1004
  %1068 = vmatpush1.bf16.msra.mxu0 %v1003
  %1069 = vmatprep.subr.bf16.mxu0 %v1006
  %1070 = vmatpush1.bf16.msra.mxu0 %v1005
  %1071 = vmatprep.subr.bf16.mxu0 %v1008
  %1072 = vmatpush1.bf16.msra.mxu0 %v1007
  %1073 = vmatprep.subr.bf16.mxu0 %v1010
  %1074 = vmatpush1.bf16.msra.mxu0 %v1009
  %1075 = vmatprep.subr.bf16.mxu0 %v1012
  %1076 = vmatpush1.bf16.msra.mxu0 %v1011
  %1077 = vmatprep.subr.bf16.mxu0 %v1014
  %1078 = vmatpush1.bf16.msra.mxu0 %v1013
  %1079 = vmatprep.subr.bf16.mxu0 %v1016
  %1080 = vmatpush1.bf16.msra.mxu0 %v1015
  %1081 = vmatprep.subr.bf16.mxu0 %v1018
  %1082 = vmatpush1.bf16.msra.mxu0 %v1017
  %1083 = vmatprep.subr.bf16.mxu0 %v1020
  %1084 = vmatpush1.bf16.msra.mxu0 %v1019
  %1085 = vmatprep.subr.bf16.mxu0 %v1022
  %1086 = vmatpush1.bf16.msra.mxu0 %v1021
  %1087 = vmatprep.mubr.bf16.mxu0 %v646
  %1088 = vmatmul.mubr.bf16.gmra.mrb[0].mxu0 %v645
  %v1089 = vpop.f32.mrb[0].mxu0
  %v1090 = vadd.f32 0.0, %v1089
  %v1091 = vpop.f32.mrb[0].mxu0
  %v1092 = vadd.f32 0.0, %v1091
  %v1093 = vpop.f32.mrb[0].mxu0
  %v1094 = vpop.f32.mrb[0].mxu0
  %1095 = vdwg.mxu0
  %v1096 = vadd.f32 %v889, %v1090
  %v1097 = vadd.f32 %v891, %v1092
  %v1098 = vlaneseq
  %v1099 = vshrl.u32 %v1098, 7
  %v1100 = vsub.s32 1, %v1099
  %v1101 = vrot.slane %v15, %v1100
  %v1102 = vlaneseq
  %v1103 = vshrl.u32 %v1102, 7
  %v1104 = vsub.s32 1, %v1103
  %v1105 = vrot.slane %v16, %v1104
  %v1106 = vadd.f32 %v1096, %v1101
  %v1107 = vadd.f32 %v1097, %v1105
  %v1108 = vadd.f32 %v1106, %v89
  %v1109 = vadd.f32 %v1107, %v90
  %s1110 = scalar_lea.vmem %s1, 1024
  %v1111 = vld [vmem:[%s1110] sm:$0xff]
  %v1112 = vld [vmem:[%s1110 + $0x8] sm:$0xff]
  %v1113 = vld [vmem:[%s1110 + $0x10] sm:$0xff]
  %v1114 = vld [vmem:[%s1110 + $0x18] sm:$0xff]
  %v1115 = vld [vmem:[%s1110 + $0x20] sm:$0xff]
  %v1116 = vld [vmem:[%s1110 + $0x28] sm:$0xff]
  %v1117 = vld [vmem:[%s1110 + $0x30] sm:$0xff]
  %v1118 = vld [vmem:[%s1110 + $0x38] sm:$0xff]
  %v1119 = vld [vmem:[%s1110 + $0x40] sm:$0xff]
  %v1120 = vld [vmem:[%s1110 + $0x48] sm:$0xff]
  %v1121 = vld [vmem:[%s1110 + $0x50] sm:$0xff]
  %v1122 = vld [vmem:[%s1110 + $0x58] sm:$0xff]
  %v1123 = vld [vmem:[%s1110 + $0x60] sm:$0xff]
  %v1124 = vld [vmem:[%s1110 + $0x68] sm:$0xff]
  %v1125 = vld [vmem:[%s1110 + $0x70] sm:$0xff]
  %v1126 = vld [vmem:[%s1110 + $0x78] sm:$0xff]
  %v1127 = vld [vmem:[%s1110 + $0x80] sm:$0xff]
  %v1128 = vld [vmem:[%s1110 + $0x88] sm:$0xff]
  %v1129 = vld [vmem:[%s1110 + $0x90] sm:$0xff]
  %v1130 = vld [vmem:[%s1110 + $0x98] sm:$0xff]
  %v1131 = vld [vmem:[%s1110 + $0xa0] sm:$0xff]
  %v1132 = vld [vmem:[%s1110 + $0xa8] sm:$0xff]
  %v1133 = vld [vmem:[%s1110 + $0xb0] sm:$0xff]
  %v1134 = vld [vmem:[%s1110 + $0xb8] sm:$0xff]
  %v1135 = vld [vmem:[%s1110 + $0xc0] sm:$0xff]
  %v1136 = vld [vmem:[%s1110 + $0xc8] sm:$0xff]
  %v1137 = vld [vmem:[%s1110 + $0xd0] sm:$0xff]
  %v1138 = vld [vmem:[%s1110 + $0xd8] sm:$0xff]
  %v1139 = vld [vmem:[%s1110 + $0xe0] sm:$0xff]
  %v1140 = vld [vmem:[%s1110 + $0xe8] sm:$0xff]
  %v1141 = vld [vmem:[%s1110 + $0xf0] sm:$0xff]
  %v1142 = vld [vmem:[%s1110 + $0xf8] sm:$0xff]
  %v1143 = vpack.c.bf16 %v1108, %v1108
  %v1144 = vpack.c.bf16 %v1109, %v1109
  %v1145 = vunpack.c.l.bf16 %v1143
  %v1146 = vunpack.c.l.bf16 %v1144
  %v1147 = vsub.f32 %v1108, %v1145
  %v1148 = vsub.f32 %v1109, %v1146
  %v1149 = vpack.c.bf16 %v1147, %v1147
  %v1150 = vpack.c.bf16 %v1148, %v1148
  %v1183 = vunpack.c.l.b16 %v1111
  %v1184 = vunpack.c.h.b16 %v1111
  %v1185 = vunpack.c.l.b16 %v1112
  %v1186 = vunpack.c.h.b16 %v1112
  %v1187 = vunpack.c.l.b16 %v1113
  %v1188 = vunpack.c.h.b16 %v1113
  %v1189 = vunpack.c.l.b16 %v1114
  %v1190 = vunpack.c.h.b16 %v1114
  %v1191 = vunpack.c.l.b16 %v1115
  %v1192 = vunpack.c.h.b16 %v1115
  %v1193 = vunpack.c.l.b16 %v1116
  %v1194 = vunpack.c.h.b16 %v1116
  %v1195 = vunpack.c.l.b16 %v1117
  %v1196 = vunpack.c.h.b16 %v1117
  %v1197 = vunpack.c.l.b16 %v1118
  %v1198 = vunpack.c.h.b16 %v1118
  %v1199 = vunpack.c.l.b16 %v1119
  %v1200 = vunpack.c.h.b16 %v1119
  %v1201 = vunpack.c.l.b16 %v1120
  %v1202 = vunpack.c.h.b16 %v1120
  %v1203 = vunpack.c.l.b16 %v1121
  %v1204 = vunpack.c.h.b16 %v1121
  %v1205 = vunpack.c.l.b16 %v1122
  %v1206 = vunpack.c.h.b16 %v1122
  %v1207 = vunpack.c.l.b16 %v1123
  %v1208 = vunpack.c.h.b16 %v1123
  %v1209 = vunpack.c.l.b16 %v1124
  %v1210 = vunpack.c.h.b16 %v1124
  %v1211 = vunpack.c.l.b16 %v1125
  %v1212 = vunpack.c.h.b16 %v1125
  %v1213 = vunpack.c.l.b16 %v1126
  %v1214 = vunpack.c.h.b16 %v1126
  %v1215 = vunpack.c.l.b16 %v1127
  %v1216 = vunpack.c.h.b16 %v1127
  %v1217 = vunpack.c.l.b16 %v1128
  %v1218 = vunpack.c.h.b16 %v1128
  %v1219 = vunpack.c.l.b16 %v1129
  %v1220 = vunpack.c.h.b16 %v1129
  %v1221 = vunpack.c.l.b16 %v1130
  %v1222 = vunpack.c.h.b16 %v1130
  %v1223 = vunpack.c.l.b16 %v1131
  %v1224 = vunpack.c.h.b16 %v1131
  %v1225 = vunpack.c.l.b16 %v1132
  %v1226 = vunpack.c.h.b16 %v1132
  %v1227 = vunpack.c.l.b16 %v1133
  %v1228 = vunpack.c.h.b16 %v1133
  %v1229 = vunpack.c.l.b16 %v1134
  %v1230 = vunpack.c.h.b16 %v1134
  %v1231 = vunpack.c.l.b16 %v1135
  %v1232 = vunpack.c.h.b16 %v1135
  %v1233 = vunpack.c.l.b16 %v1136
  %v1234 = vunpack.c.h.b16 %v1136
  %v1235 = vunpack.c.l.b16 %v1137
  %v1236 = vunpack.c.h.b16 %v1137
  %v1237 = vunpack.c.l.b16 %v1138
  %v1238 = vunpack.c.h.b16 %v1138
  %v1239 = vunpack.c.l.b16 %v1139
  %v1240 = vunpack.c.h.b16 %v1139
  %v1241 = vunpack.c.l.b16 %v1140
  %v1242 = vunpack.c.h.b16 %v1140
  %v1243 = vunpack.c.l.b16 %v1141
  %v1244 = vunpack.c.h.b16 %v1141
  %v1245 = vunpack.c.l.b16 %v1142
  %v1246 = vunpack.c.h.b16 %v1142
  %v1247 = vpack.c.b16 %v1185, %v1183
  %v1248 = vpack.c.b16 %v1186, %v1184
  %v1249 = vpack.c.b16 %v1189, %v1187
  %v1250 = vpack.c.b16 %v1190, %v1188
  %v1251 = vpack.c.b16 %v1193, %v1191
  %v1252 = vpack.c.b16 %v1194, %v1192
  %v1253 = vpack.c.b16 %v1197, %v1195
  %v1254 = vpack.c.b16 %v1198, %v1196
  %v1255 = vpack.c.b16 %v1201, %v1199
  %v1256 = vpack.c.b16 %v1202, %v1200
  %v1257 = vpack.c.b16 %v1205, %v1203
  %v1258 = vpack.c.b16 %v1206, %v1204
  %v1259 = vpack.c.b16 %v1209, %v1207
  %v1260 = vpack.c.b16 %v1210, %v1208
  %v1261 = vpack.c.b16 %v1213, %v1211
  %v1262 = vpack.c.b16 %v1214, %v1212
  %v1263 = vpack.c.b16 %v1217, %v1215
  %v1264 = vpack.c.b16 %v1218, %v1216
  %v1265 = vpack.c.b16 %v1221, %v1219
  %v1266 = vpack.c.b16 %v1222, %v1220
  %v1267 = vpack.c.b16 %v1225, %v1223
  %v1268 = vpack.c.b16 %v1226, %v1224
  %v1269 = vpack.c.b16 %v1229, %v1227
  %v1270 = vpack.c.b16 %v1230, %v1228
  %v1271 = vpack.c.b16 %v1233, %v1231
  %v1272 = vpack.c.b16 %v1234, %v1232
  %v1273 = vpack.c.b16 %v1237, %v1235
  %v1274 = vpack.c.b16 %v1238, %v1236
  %v1275 = vpack.c.b16 %v1241, %v1239
  %v1276 = vpack.c.b16 %v1242, %v1240
  %v1277 = vpack.c.b16 %v1245, %v1243
  %v1278 = vpack.c.b16 %v1246, %v1244
  %1311 = vmatprep.subr.bf16.mxu0 %v1248
  %1312 = vmatpush1.bf16.msra.mxu0 %v1247
  %1313 = vmatprep.subr.bf16.mxu0 %v1250
  %1314 = vmatpush1.bf16.msra.mxu0 %v1249
  %1315 = vmatprep.subr.bf16.mxu0 %v1252
  %1316 = vmatpush1.bf16.msra.mxu0 %v1251
  %1317 = vmatprep.subr.bf16.mxu0 %v1254
  %1318 = vmatpush1.bf16.msra.mxu0 %v1253
  %1319 = vmatprep.subr.bf16.mxu0 %v1256
  %1320 = vmatpush1.bf16.msra.mxu0 %v1255
  %1321 = vmatprep.subr.bf16.mxu0 %v1258
  %1322 = vmatpush1.bf16.msra.mxu0 %v1257
  %1323 = vmatprep.subr.bf16.mxu0 %v1260
  %1324 = vmatpush1.bf16.msra.mxu0 %v1259
  %1325 = vmatprep.subr.bf16.mxu0 %v1262
  %1326 = vmatpush1.bf16.msra.mxu0 %v1261
  %1327 = vmatprep.subr.bf16.mxu0 %v1264
  %1328 = vmatpush1.bf16.msra.mxu0 %v1263
  %1329 = vmatprep.subr.bf16.mxu0 %v1266
  %1330 = vmatpush1.bf16.msra.mxu0 %v1265
  %1331 = vmatprep.subr.bf16.mxu0 %v1268
  %1332 = vmatpush1.bf16.msra.mxu0 %v1267
  %1333 = vmatprep.subr.bf16.mxu0 %v1270
  %1334 = vmatpush1.bf16.msra.mxu0 %v1269
  %1335 = vmatprep.subr.bf16.mxu0 %v1272
  %1336 = vmatpush1.bf16.msra.mxu0 %v1271
  %1337 = vmatprep.subr.bf16.mxu0 %v1274
  %1338 = vmatpush1.bf16.msra.mxu0 %v1273
  %1339 = vmatprep.subr.bf16.mxu0 %v1276
  %1340 = vmatpush1.bf16.msra.mxu0 %v1275
  %1341 = vmatprep.subr.bf16.mxu0 %v1278
  %1342 = vmatpush1.bf16.msra.mxu0 %v1277
  %1343 = vmatprep.mubr.bf16.mxu0 %v1150
  %1344 = vmatmul.mubr.bf16.gmra.mrb[0].mxu0 %v1149
  %v1345 = vpop.f32.mrb[0].mxu0
  %v1346 = vadd.f32 0.0, %v1345
  %v1347 = vpop.f32.mrb[0].mxu0
  %v1348 = vadd.f32 0.0, %v1347
  %v1349 = vpop.f32.mrb[0].mxu0
  %v1350 = vpop.f32.mrb[0].mxu0
  %1351 = vdwg.mxu0
  %1352 = vmatprep.subr.bf16.mxu0 %v1248
  %1353 = vmatpush1.bf16.msra.mxu0 %v1247
  %1354 = vmatprep.subr.bf16.mxu0 %v1250
  %1355 = vmatpush1.bf16.msra.mxu0 %v1249
  %1356 = vmatprep.subr.bf16.mxu0 %v1252
  %1357 = vmatpush1.bf16.msra.mxu0 %v1251
  %1358 = vmatprep.subr.bf16.mxu0 %v1254
  %1359 = vmatpush1.bf16.msra.mxu0 %v1253
  %1360 = vmatprep.subr.bf16.mxu0 %v1256
  %1361 = vmatpush1.bf16.msra.mxu0 %v1255
  %1362 = vmatprep.subr.bf16.mxu0 %v1258
  %1363 = vmatpush1.bf16.msra.mxu0 %v1257
  %1364 = vmatprep.subr.bf16.mxu0 %v1260
  %1365 = vmatpush1.bf16.msra.mxu0 %v1259
  %1366 = vmatprep.subr.bf16.mxu0 %v1262
  %1367 = vmatpush1.bf16.msra.mxu0 %v1261
  %1368 = vmatprep.subr.bf16.mxu0 %v1264
  %1369 = vmatpush1.bf16.msra.mxu0 %v1263
  %1370 = vmatprep.subr.bf16.mxu0 %v1266
  %1371 = vmatpush1.bf16.msra.mxu0 %v1265
  %1372 = vmatprep.subr.bf16.mxu0 %v1268
  %1373 = vmatpush1.bf16.msra.mxu0 %v1267
  %1374 = vmatprep.subr.bf16.mxu0 %v1270
  %1375 = vmatpush1.bf16.msra.mxu0 %v1269
  %1376 = vmatprep.subr.bf16.mxu0 %v1272
  %1377 = vmatpush1.bf16.msra.mxu0 %v1271
  %1378 = vmatprep.subr.bf16.mxu0 %v1274
  %1379 = vmatpush1.bf16.msra.mxu0 %v1273
  %1380 = vmatprep.subr.bf16.mxu0 %v1276
  %1381 = vmatpush1.bf16.msra.mxu0 %v1275
  %1382 = vmatprep.subr.bf16.mxu0 %v1278
  %1383 = vmatpush1.bf16.msra.mxu0 %v1277
  %1384 = vmatprep.mubr.bf16.mxu0 %v1144
  %1385 = vmatmul.mubr.bf16.gmra.mrb[0].mxu0 %v1143
  %v1386 = vpop.f32.mrb[0].mxu0
  %v1387 = vadd.f32 %v1346, %v1386
  %v1388 = vpop.f32.mrb[0].mxu0
  %v1389 = vadd.f32 %v1348, %v1388
  %v1390 = vpop.f32.mrb[0].mxu0
  %v1391 = vpop.f32.mrb[0].mxu0
  %1392 = vdwg.mxu0
  %v1393 = vmul.f32 %v1387, 0.03125
  %v1394 = vmul.f32 %v1389, 0.03125
  %v1395 = vsub.f32 %v1108, %v1393
  %v1396 = vsub.f32 %v1109, %v1394
  %v1397 = vmul.f32 %v1395, %v1395
  %v1398 = vmul.f32 %v1396, %v1396
  %v1399 = vpack.c.bf16 %v1397, %v1397
  %v1400 = vpack.c.bf16 %v1398, %v1398
  %v1401 = vunpack.c.l.bf16 %v1399
  %v1402 = vunpack.c.l.bf16 %v1400
  %v1403 = vsub.f32 %v1397, %v1401
  %v1404 = vsub.f32 %v1398, %v1402
  %v1405 = vpack.c.bf16 %v1403, %v1403
  %v1406 = vpack.c.bf16 %v1404, %v1404
  %1407 = vmatprep.subr.bf16.mxu0 %v1248
  %1408 = vmatpush1.bf16.msra.mxu0 %v1247
  %1409 = vmatprep.subr.bf16.mxu0 %v1250
  %1410 = vmatpush1.bf16.msra.mxu0 %v1249
  %1411 = vmatprep.subr.bf16.mxu0 %v1252
  %1412 = vmatpush1.bf16.msra.mxu0 %v1251
  %1413 = vmatprep.subr.bf16.mxu0 %v1254
  %1414 = vmatpush1.bf16.msra.mxu0 %v1253
  %1415 = vmatprep.subr.bf16.mxu0 %v1256
  %1416 = vmatpush1.bf16.msra.mxu0 %v1255
  %1417 = vmatprep.subr.bf16.mxu0 %v1258
  %1418 = vmatpush1.bf16.msra.mxu0 %v1257
  %1419 = vmatprep.subr.bf16.mxu0 %v1260
  %1420 = vmatpush1.bf16.msra.mxu0 %v1259
  %1421 = vmatprep.subr.bf16.mxu0 %v1262
  %1422 = vmatpush1.bf16.msra.mxu0 %v1261
  %1423 = vmatprep.subr.bf16.mxu0 %v1264
  %1424 = vmatpush1.bf16.msra.mxu0 %v1263
  %1425 = vmatprep.subr.bf16.mxu0 %v1266
  %1426 = vmatpush1.bf16.msra.mxu0 %v1265
  %1427 = vmatprep.subr.bf16.mxu0 %v1268
  %1428 = vmatpush1.bf16.msra.mxu0 %v1267
  %1429 = vmatprep.subr.bf16.mxu0 %v1270
  %1430 = vmatpush1.bf16.msra.mxu0 %v1269
  %1431 = vmatprep.subr.bf16.mxu0 %v1272
  %1432 = vmatpush1.bf16.msra.mxu0 %v1271
  %1433 = vmatprep.subr.bf16.mxu0 %v1274
  %1434 = vmatpush1.bf16.msra.mxu0 %v1273
  %1435 = vmatprep.subr.bf16.mxu0 %v1276
  %1436 = vmatpush1.bf16.msra.mxu0 %v1275
  %1437 = vmatprep.subr.bf16.mxu0 %v1278
  %1438 = vmatpush1.bf16.msra.mxu0 %v1277
  %1439 = vmatprep.mubr.bf16.mxu0 %v1406
  %1440 = vmatmul.mubr.bf16.gmra.mrb[0].mxu0 %v1405
  %v1441 = vpop.f32.mrb[0].mxu0
  %v1442 = vadd.f32 0.0, %v1441
  %v1443 = vpop.f32.mrb[0].mxu0
  %v1444 = vadd.f32 0.0, %v1443
  %v1445 = vpop.f32.mrb[0].mxu0
  %v1446 = vpop.f32.mrb[0].mxu0
  %1447 = vdwg.mxu0
  %1448 = vmatprep.subr.bf16.mxu0 %v1248
  %1449 = vmatpush1.bf16.msra.mxu0 %v1247
  %1450 = vmatprep.subr.bf16.mxu0 %v1250
  %1451 = vmatpush1.bf16.msra.mxu0 %v1249
  %1452 = vmatprep.subr.bf16.mxu0 %v1252
  %1453 = vmatpush1.bf16.msra.mxu0 %v1251
  %1454 = vmatprep.subr.bf16.mxu0 %v1254
  %1455 = vmatpush1.bf16.msra.mxu0 %v1253
  %1456 = vmatprep.subr.bf16.mxu0 %v1256
  %1457 = vmatpush1.bf16.msra.mxu0 %v1255
  %1458 = vmatprep.subr.bf16.mxu0 %v1258
  %1459 = vmatpush1.bf16.msra.mxu0 %v1257
  %1460 = vmatprep.subr.bf16.mxu0 %v1260
  %1461 = vmatpush1.bf16.msra.mxu0 %v1259
  %1462 = vmatprep.subr.bf16.mxu0 %v1262
  %1463 = vmatpush1.bf16.msra.mxu0 %v1261
  %1464 = vmatprep.subr.bf16.mxu0 %v1264
  %1465 = vmatpush1.bf16.msra.mxu0 %v1263
  %1466 = vmatprep.subr.bf16.mxu0 %v1266
  %1467 = vmatpush1.bf16.msra.mxu0 %v1265
  %1468 = vmatprep.subr.bf16.mxu0 %v1268
  %1469 = vmatpush1.bf16.msra.mxu0 %v1267
  %1470 = vmatprep.subr.bf16.mxu0 %v1270
  %1471 = vmatpush1.bf16.msra.mxu0 %v1269
  %1472 = vmatprep.subr.bf16.mxu0 %v1272
  %1473 = vmatpush1.bf16.msra.mxu0 %v1271
  %1474 = vmatprep.subr.bf16.mxu0 %v1274
  %1475 = vmatpush1.bf16.msra.mxu0 %v1273
  %1476 = vmatprep.subr.bf16.mxu0 %v1276
  %1477 = vmatpush1.bf16.msra.mxu0 %v1275
  %1478 = vmatprep.subr.bf16.mxu0 %v1278
  %1479 = vmatpush1.bf16.msra.mxu0 %v1277
  %1480 = vmatprep.mubr.bf16.mxu0 %v1400
  %1481 = vmatmul.mubr.bf16.gmra.mrb[0].mxu0 %v1399
  %v1482 = vpop.f32.mrb[0].mxu0
  %v1483 = vadd.f32 %v1442, %v1482
  %v1484 = vpop.f32.mrb[0].mxu0
  %v1485 = vadd.f32 %v1444, %v1484
  %v1486 = vpop.f32.mrb[0].mxu0
  %v1487 = vpop.f32.mrb[0].mxu0
  %1488 = vdwg.mxu0
  %v1489 = vmul.f32 %v1483, 0.03125
  %v1490 = vmul.f32 %v1485, 0.03125
  %v1491 = vadd.f32 %v1489, 1e-05
  %v1492 = vadd.f32 %v1490, 1e-05
  %v1493 = vrsqrt.pop %v1491
  %v1494 = vrsqrt.pop %v1492
  %v1495 = vmul.f32 %v1395, %v1493
  %v1496 = vmul.f32 %v1396, %v1494
  %v1497 = vlaneseq
  %v1498 = vshrl.u32 %v1497, 7
  %v1499 = vsub.s32 2, %v1498
  %v1500 = vrot.slane %v15, %v1499
  %v1501 = vlaneseq
  %v1502 = vshrl.u32 %v1501, 7
  %v1503 = vsub.s32 2, %v1502
  %v1504 = vrot.slane %v16, %v1503
  %v1505 = vmul.f32 %v1495, %v1500
  %v1506 = vmul.f32 %v1496, %v1504
  %v1507 = vlaneseq
  %v1508 = vshrl.u32 %v1507, 7
  %v1509 = vsub.s32 3, %v1508
  %v1510 = vrot.slane %v15, %v1509
  %v1511 = vlaneseq
  %v1512 = vshrl.u32 %v1511, 7
  %v1513 = vsub.s32 3, %v1512
  %v1514 = vrot.slane %v16, %v1513
  %v1515 = vadd.f32 %v1505, %v1510
  %v1516 = vadd.f32 %v1506, %v1514
  %v1519 = vcombine.low %v1515, %v1516
  %v1521 = vunpack.c.l.s4 1983009808
  %v1522 = vunpack.c.0.s8 %v1521
  %v1523 = vlaneseq
  %v1524 = vshrl.u32 %v1523, 7
  %v1525 = vsub.s32 %v1522, %v1524
  %v1526 = vrot.slane %v1519, %v1525
  %1528 = vst [vmem:[%s3] sm:$0xf] %v1526
  // Predicated region
  $region14: #{apply.1} parent=0 // pred_check
    _
  $region15: #{apply.1} parent=0 // pred_check_branch
    %1530 = sbr.rel (0) target = $region17
  $region16: #{apply.1} parent=0 // pred_region
    _
  $region17: #{apply.1} parent=0 // pred_fallthru
    _
  // Predicated region
  $region18: #{apply.1} parent=0 // pred_check
    _
  $region19: #{apply.1} parent=0 // pred_check_branch
    %1532 = sbr.rel (0) target = $region21
  $region20: #{apply.1} parent=0 // pred_region
    _
  $region21: #{apply.1} parent=0 // pred_fallthru
    _

</llo_original>
